<compile_context>
chip_gen: v5e
topology: v5e:2x2
jax: 0.10.0
libtpu: 0.0.40
codegen_flags: <defaults>
</compile_context>

<pallas_src>
import math

import jax
import jax.numpy as jnp
from jax.experimental import pallas as pl
from jax.experimental.pallas import tpu as pltpu


def _round_up(x, m):
    return (x + m - 1) // m * m


def _slab_bytes(shape, itemsize):
    """Approx VMEM footprint of a block/value, including lane (128) and sublane padding."""
    shape = tuple(int(d) for d in shape)
    if len(shape) < 2:
        shape = (1,) + shape
    lane = _round_up(shape[-1], 128)
    sub = _round_up(shape[-2], 8 * max(1, 4 // itemsize))
    lead = 1
    for d in shape[:-2]:
        lead *= d
    return lead * sub * lane * itemsize


def _conv3x3_kernel(xm_ref, xh_ref, w_ref, b_ref, o_ref):
    # xm_ref: (1, TH, W+2, Cin)   main row band of the padded image (bf16)
    # xh_ref: (1, 2,  W+2, Cin)   2-row bottom halo of the band (bf16)
    # w_ref : (9*Cin, Cout_pad)   (ky, kx, cin)-flattened conv weights (bf16)
    # b_ref : (1, Cout_pad)       bias (f32, zero-padded)
    # o_ref : (1, Cout, TH*W)     output tile: channel-major, lane-dense flat spatial (f32)
    TH = xm_ref.shape[1]
    W = xm_ref.shape[2] - 2
    Cin = xm_ref.shape[3]
    Cout = o_ref.shape[1]

    # One load of the (TH+2)-row band per tile; all 9 taps are static value slices of it.
    band = jnp.concatenate([xm_ref[0], xh_ref[0]], axis=0)            # (TH+2, W+2, Cin)

    pieces = []
    for dy in range(3):
        for dx in range(3):
            pieces.append(band[dy:dy + TH, dx:dx + W, :])             # (TH, W, Cin)
    patch = jnp.concatenate(pieces, axis=-1).reshape(TH * W, 9 * Cin)  # bf16, K = 9*Cin

    # Single MXU matmul per tile; accumulation stays inside the MXU (f32 result pop).
    res = jnp.dot(patch, w_ref[...], preferred_element_type=jnp.float32)  # (TH*W, Cout_pad)
    res = res + b_ref[...]

    # Transpose on the (otherwise idle) XLU so the store is channel-major with the spatial
    # dim lane-dense -> exact-byte NCHW writeback, no padded-Cout lanes hit HBM.
    res_t = jnp.transpose(res)                                        # (Cout_pad, TH*W)
    o_ref[...] = res_t[:Cout, :].reshape(1, Cout, TH * W)


def mask_classifier_forward(x_nchw, weight_hwio, bias, *, tile_h=None):
    """Conv2d(Cin, Cout, kernel_size=3, stride=1, padding=1) forward.

    x_nchw:      (N, Cin, H, W)    float32
    weight_hwio: (3, 3, Cin, Cout) float32
    bias:        (Cout,)           float32
    returns:     (N, Cout, H, W)   float32
    """
    N, Cin, H, W = (int(d) for d in x_nchw.shape)
    Cout = int(weight_hwio.shape[-1])

    LANE = 128
    Cout_pad = _round_up(Cout, LANE)

    # tile_h must keep tile_h*W a multiple of 128 (lane-dense flat-spatial output block) and
    # be even/8-aligned (2-row halo block index, aligned row offsets).
    step = max(LANE // math.gcd(W, LANE), 8)
    if tile_h is None:
        target_elems = 2048                                # target TH*W (per perf guidance)
        tile_h = max(step, (target_elems // max(W, 1)) // step * step)
    tile_h = _round_up(int(tile_h), step)
    tile_h = min(tile_h, _round_up(H, step))

    # Generation-dependent VMEM budget: ~80% of physical VMEM (v5e/v6e ~102 MiB, v7x ~51 MiB).
    try:
        phys_vmem = int(getattr(pltpu.get_tpu_info(), "vmem_capacity_bytes", 64 << 20))
    except Exception:
        phys_vmem = 64 << 20
    budget = max(32 << 20, phys_vmem * 4 // 5)

    def vmem_estimate(th):
        m = th * W
        blocks = 2 * (_slab_bytes((th, W + 2, Cin), 2)       # main band   (double buffered)
                      + _slab_bytes((2, W + 2, Cin), 2)       # halo
                      + _slab_bytes((9 * Cin, Cout_pad), 2)   # weights
                      + _slab_bytes((1, Cout_pad), 4)         # bias
                      + _slab_bytes((Cout, m), 4))            # output tile
        temps = (_slab_bytes((th + 2, W + 2, Cin), 2)         # concatenated band
                 + _slab_bytes((m, 9 * Cin), 2)               # im2col patch
                 + 2 * _slab_bytes((m, Cout_pad), 4))         # matmul result + its transpose
        return blocks + temps + (4 << 20)

    while tile_h > step and vmem_estimate(tile_h) > budget:
        tile_h -= step

    n_ht = pl.cdiv(H, tile_h)
    Hp = n_ht * tile_h
    half_tile = tile_h // 2

    # Layout glue: NCHW -> NHWC bf16, 1-px spatial halo, H rounded up to Hp.
    x_nhwc = jnp.transpose(x_nchw, (0, 2, 3, 1)).astype(jnp.bfloat16)        # (N, H, W, Cin)
    x_pad = jnp.pad(x_nhwc, ((0, 0), (1, 1 + (Hp - H)), (1, 1), (0, 0)))     # (N, Hp+2, W+2, Cin)

    # Weights: pad Cout to 128 lanes, flatten (ky, kx, cin) into K = 9*Cin.
    w = jnp.pad(weight_hwio, ((0, 0), (0, 0), (0, 0), (0, Cout_pad - Cout)))
    w = w.reshape(9 * Cin, Cout_pad).astype(jnp.bfloat16)                    # (9*Cin, Cout_pad)
    b2 = jnp.pad(bias, (0, Cout_pad - Cout)).reshape(1, Cout_pad).astype(jnp.float32)

    vmem_limit = int(min(max(vmem_estimate(tile_h), 32 << 20), budget))

    out_flat = pl.pallas_call(
        _conv3x3_kernel,
        out_shape=jax.ShapeDtypeStruct((N, Cout, Hp * W), jnp.float32),
        grid_spec=pltpu.PrefetchScalarGridSpec(
            num_scalar_prefetch=0,
            grid=(n_ht, N),                          # H-tiles outermost -> megacore splits them
            in_specs=[
                # main band: padded rows [ht*tile_h, ht*tile_h + tile_h)
                pl.BlockSpec((1, tile_h, W + 2, Cin), lambda ht, n: (n, ht, 0, 0)),
                # 2-row bottom halo: padded rows [(ht+1)*tile_h, +2)  (block units of 2 rows)
                pl.BlockSpec((1, 2, W + 2, Cin),
                             lambda ht, n: (n, (ht + 1) * half_tile, 0, 0)),
                pl.BlockSpec((9 * Cin, Cout_pad), lambda ht, n: (0, 0)),
                pl.BlockSpec((1, Cout_pad), lambda ht, n: (0, 0)),
            ],
            out_specs=pl.BlockSpec((1, Cout, tile_h * W), lambda ht, n: (n, 0, ht)),
        ),
        compiler_params=pltpu.CompilerParams(
            dimension_semantics=("parallel", "parallel"),
            vmem_limit_bytes=vmem_limit,
        ),
    )(x_pad, x_pad, w, b2)

    # Output is already NCHW (channel-major, flat spatial): free reshape + drop H round-up.
    return out_flat.reshape(N, Cout, Hp, W)[:, :, :H, :]


if __name__ == "__main__":
    # Small shapes consistent with the module (Conv2d(in_features, num_class, 3, 1, 1)).
    N, Cin, H, W = 2, 32, 16, 16
    Cout = 21  # num_class

    key = jax.random.PRNGKey(0)
    kx, kw, kb = jax.random.split(key, 3)

    x = jax.random.normal(kx, (N, Cin, H, W), dtype=jnp.float32)
    weight_hwio = jax.random.normal(kw, (3, 3, Cin, Cout), dtype=jnp.float32) * 0.05
    bias = jax.random.normal(kb, (Cout,), dtype=jnp.float32) * 0.05

    out = mask_classifier_forward(x, weight_hwio, bias)
    out = jax.block_until_ready(out)

    # Cross-check against XLA's conv (same semantics as nn.Conv2d, NCHW).
    weight_oihw = jnp.transpose(weight_hwio, (3, 2, 0, 1))  # (Cout, Cin, 3, 3)
    ref = jax.lax.conv_general_dilated(
        x, weight_oihw,
        window_strides=(1, 1),
        padding=((1, 1), (1, 1)),
        dimension_numbers=("NCHW", "OIHW", "NCHW"),
        precision=jax.lax.Precision.HIGHEST,
    ) + bias.reshape(1, Cout, 1, 1)
    ref = jax.block_until_ready(ref)

    assert out.shape == (N, Cout, H, W), out.shape
    max_err = float(jnp.max(jnp.abs(out - ref)))
    # Precision contract: bf16 MXU inputs with f32 accumulation vs the f32 reference.
    assert jnp.allclose(out, ref, atol=5e-2, rtol=5e-2), max_err

    print("KERNEL_OK")
</pallas_src>

<mosaic_0001>
module attributes {stable_mosaic.version = 11 : i64} {
  func.func @_conv3x3_kernel(%arg0: i32, %arg1: i32, %arg2: memref<1x16x18x32xbf16, #tpu.memory_space<vmem>>, %arg3: memref<1x2x18x32xbf16, #tpu.memory_space<vmem>>, %arg4: memref<288x128xbf16, #tpu.memory_space<vmem>>, %arg5: memref<1x128xf32, #tpu.memory_space<vmem>>, %arg6: memref<1x21x256xf32, #tpu.memory_space<vmem>>) attributes {dimension_semantics = [#tpu.dimension_semantics<parallel>, #tpu.dimension_semantics<parallel>], iteration_bounds = array<i64: 1, 2>, scalar_prefetch = 0 : i64, scratch_operands = 0 : i64, tpu.core_type = #tpu.core_type<tc>, window_params = [{transform_indices = @transform_0, window_bounds = array<i64: 1, 16, 18, 32>}, {transform_indices = @transform_1, window_bounds = array<i64: 1, 2, 18, 32>}, {pipeline_mode = #tpu.pipeline_mode<synchronous>, transform_indices = @transform_2, window_bounds = array<i64: 288, 128>}, {pipeline_mode = #tpu.pipeline_mode<synchronous>, transform_indices = @transform_3, window_bounds = array<i64: 1, 128>}, {transform_indices = @transform_4, window_bounds = array<i64: 1, 21, 256>}]} {
    %c0 = arith.constant 0 : index
    %c0_0 = arith.constant 0 : index
    %c0_1 = arith.constant 0 : index
    %c0_2 = arith.constant 0 : index
    %0 = vector.load %arg2[%c0, %c0_0, %c0_1, %c0_2] : memref<1x16x18x32xbf16, #tpu.memory_space<vmem>>, vector<1x16x18x32xbf16>
    %1 = vector.shape_cast %0 : vector<1x16x18x32xbf16> to vector<16x18x32xbf16>
    %c0_3 = arith.constant 0 : index
    %c0_4 = arith.constant 0 : index
    %c0_5 = arith.constant 0 : index
    %c0_6 = arith.constant 0 : index
    %2 = vector.load %arg3[%c0_3, %c0_4, %c0_5, %c0_6] : memref<1x2x18x32xbf16, #tpu.memory_space<vmem>>, vector<1x2x18x32xbf16>
    %3 = vector.shape_cast %2 : vector<1x2x18x32xbf16> to vector<2x18x32xbf16>
    %4 = tpu.concatenate %1, %3 in 0 : vector<16x18x32xbf16>, vector<2x18x32xbf16> -> vector<18x18x32xbf16>
    %5 = vector.extract_strided_slice %4 {offsets = [0, 0, 0], sizes = [16, 16, 32], strides = [1, 1, 1]} : vector<18x18x32xbf16> to vector<16x16x32xbf16>
    %6 = vector.extract_strided_slice %4 {offsets = [0, 1, 0], sizes = [16, 16, 32], strides = [1, 1, 1]} : vector<18x18x32xbf16> to vector<16x16x32xbf16>
    %7 = vector.extract_strided_slice %4 {offsets = [0, 2, 0], sizes = [16, 16, 32], strides = [1, 1, 1]} : vector<18x18x32xbf16> to vector<16x16x32xbf16>
    %8 = vector.extract_strided_slice %4 {offsets = [1, 0, 0], sizes = [16, 16, 32], strides = [1, 1, 1]} : vector<18x18x32xbf16> to vector<16x16x32xbf16>
    %9 = vector.extract_strided_slice %4 {offsets = [1, 1, 0], sizes = [16, 16, 32], strides = [1, 1, 1]} : vector<18x18x32xbf16> to vector<16x16x32xbf16>
    %10 = vector.extract_strided_slice %4 {offsets = [1, 2, 0], sizes = [16, 16, 32], strides = [1, 1, 1]} : vector<18x18x32xbf16> to vector<16x16x32xbf16>
    %11 = vector.extract_strided_slice %4 {offsets = [2, 0, 0], sizes = [16, 16, 32], strides = [1, 1, 1]} : vector<18x18x32xbf16> to vector<16x16x32xbf16>
    %12 = vector.extract_strided_slice %4 {offsets = [2, 1, 0], sizes = [16, 16, 32], strides = [1, 1, 1]} : vector<18x18x32xbf16> to vector<16x16x32xbf16>
    %13 = vector.extract_strided_slice %4 {offsets = [2, 2, 0], sizes = [16, 16, 32], strides = [1, 1, 1]} : vector<18x18x32xbf16> to vector<16x16x32xbf16>
    %14 = tpu.concatenate %5, %6, %7, %8, %9, %10, %11, %12, %13 in 2 : vector<16x16x32xbf16>, vector<16x16x32xbf16>, vector<16x16x32xbf16>, vector<16x16x32xbf16>, vector<16x16x32xbf16>, vector<16x16x32xbf16>, vector<16x16x32xbf16>, vector<16x16x32xbf16>, vector<16x16x32xbf16> -> vector<16x16x288xbf16>
    %15 = vector.shape_cast %14 : vector<16x16x288xbf16> to vector<256x288xbf16>
    %c0_7 = arith.constant 0 : index
    %c0_8 = arith.constant 0 : index
    %16 = vector.load %arg4[%c0_7, %c0_8] : memref<288x128xbf16, #tpu.memory_space<vmem>>, vector<288x128xbf16>
    %cst = arith.constant dense<0.000000e+00> : vector<256x128xf32>
    %17 = tpu.matmul %15, %16, %cst {dimension_numbers = #tpu.dot_dimension_numbers<[1], [0], [0], [1], [0, 0, 1, 1], [], []>} : vector<256x288xbf16>, vector<288x128xbf16>, vector<256x128xf32> -> vector<256x128xf32>
    %c0_9 = arith.constant 0 : index
    %c0_10 = arith.constant 0 : index
    %18 = vector.load %arg5[%c0_9, %c0_10] : memref<1x128xf32, #tpu.memory_space<vmem>>, vector<1x128xf32>
    %19 = vector.broadcast %18 : vector<1x128xf32> to vector<256x128xf32>
    %20 = arith.addf %17, %19 : vector<256x128xf32>
    %21 = tpu.transpose %20, [1, 0] : vector<256x128xf32> -> vector<128x256xf32>
    %22 = vector.extract_strided_slice %21 {offsets = [0, 0], sizes = [21, 256], strides = [1, 1]} : vector<128x256xf32> to vector<21x256xf32>
    %23 = vector.shape_cast %22 : vector<21x256xf32> to vector<1x21x256xf32>
    %c0_11 = arith.constant 0 : index
    %c0_12 = arith.constant 0 : index
    %c0_13 = arith.constant 0 : index
    %24 = vector.load %arg6[%c0_11, %c0_12, %c0_13] : memref<1x21x256xf32, #tpu.memory_space<vmem>>, vector<1x21x256xf32>
    tpu.vector_store %arg6[%c0_11, %c0_12, %c0_13], %23 {strides = array<i32>} : memref<1x21x256xf32, #tpu.memory_space<vmem>>, vector<1x21x256xf32>,
    return
  }
  func.func @transform_0(%arg0: i32, %arg1: i32) -> (i32, i32, i32, i32) {
    %c0_i32 = arith.constant 0 : i32
    %c0_i32_0 = arith.constant 0 : i32
    %c0_i32_1 = arith.constant 0 : i32
    return %arg1, %arg0, %c0_i32, %c0_i32_0 : i32, i32, i32, i32
  }
  func.func @transform_1(%arg0: i32, %arg1: i32) -> (i32, i32, i32, i32) {
    %c1_i32 = arith.constant 1 : i32
    %0 = arith.addi %arg0, %c1_i32 : i32
    %c8_i32 = arith.constant 8 : i32
    %1 = arith.muli %0, %c8_i32 : i32
    %c0_i32 = arith.constant 0 : i32
    %c0_i32_0 = arith.constant 0 : i32
    %c0_i32_1 = arith.constant 0 : i32
    return %arg1, %1, %c0_i32, %c0_i32_0 : i32, i32, i32, i32
  }
  func.func @transform_2(%arg0: i32, %arg1: i32) -> (i32, i32) {
    %c0_i32 = arith.constant 0 : i32
    %c0_i32_0 = arith.constant 0 : i32
    %c0_i32_1 = arith.constant 0 : i32
    return %c0_i32, %c0_i32_0 : i32, i32
  }
  func.func @transform_3(%arg0: i32, %arg1: i32) -> (i32, i32) {
    %c0_i32 = arith.constant 0 : i32
    %c0_i32_0 = arith.constant 0 : i32
    %c0_i32_1 = arith.constant 0 : i32
    return %c0_i32, %c0_i32_0 : i32, i32
  }
  func.func @transform_4(%arg0: i32, %arg1: i32) -> (i32, i32, i32) {
    %c0_i32 = arith.constant 0 : i32
    %c0_i32_0 = arith.constant 0 : i32
    return %arg1, %c0_i32, %arg0 : i32, i32, i32
  }
}

</mosaic_0001>

<llo_original>
// kernel: tpu_custom_call.1
$region0: #{tpu_custom_call.1}
  #allocation0 [shape = 'u32[]', space=smem, size = 0x4, offset = 0x4, fixed_abs, tag = 'smem constant byte address 0x4 - core index']
  #allocation1 [shape = 'u32[72,128]{1,0:T(1,128)}', space=vmem, size = 0x9000, scoped, tag = 'internal scratch']
  %s0 = inlined_call_operand.vmem [shape: bf16[2,18,18,32], index: 0, kind: input, shape index: {}]
  %s1 = inlined_call_operand.vmem [shape: bf16[2,18,18,32], index: 1, kind: input, shape index: {}]
  %s2 = inlined_call_operand.vmem [shape: bf16[288,128], index: 2, kind: input, shape index: {}]
  %s3 = inlined_call_operand.vmem [shape: f32[1,128], index: 3, kind: input, shape index: {}]
  %s4 = inlined_call_operand.vmem [shape: f32[2,21,256], index: 4, kind: output, shape index: {}]
  %s5 = sld [smem:[#allocation0]]
  $region49: #{tpu_custom_call.1} parent=0
    _
  %s7 = ssub.s32 1, %s5
  %s8 = scalar_select 0, %s7, %s5
  loop: start=0, step=1, limit=4
  $region2: #{tpu_custom_call.1} parent=0 // loop_pre_header
    _
  $region3: #{tpu_custom_call.1} parent=0 // loop_header
    %s10 = sphi 0, %s14
    %p11 = scmp.ge.s32.totalorder %s10, 4
    %s17 = sphi 0, %s29
    %s18 = sphi 0, %s25
    %s19 = sphi 0, %s17
    %s20 = sphi 0, %s18
    %s21 = sphi 0, %s19
    %s22 = sphi 0, %s20
    %s34 = sphi 0, %s36
    %s37 = sphi 0, %s34
    %s38 = sphi 0, %s37
    %s54 = sphi 0, %s38
    %s66 = sphi 0, %s68
    %s69 = sphi 0, %s66
    %s70 = sphi 0, %s69
    %s86 = sphi 0, %s70
    %s90 = sphi 0, %s90
    %s92 = sphi 0, %s90
    %s93 = sphi 0, %s92
    %s107 = sphi 0, %s93
    %s111 = sphi 0, %s111
    %s113 = sphi 0, %s111
    %s114 = sphi 0, %s113
    %s128 = sphi 0, %s114
    %s136 = sphi 0, %s138
    %s139 = sphi 0, %s136
    %s140 = sphi 0, %s139
    %s156 = sphi 0, %s140
  $region4: #{tpu_custom_call.1} parent=0 // loop_header_branch
    %13 = sbr.rel (%p11) target = $region8
  $region5: #{tpu_custom_call.1} parent=0 // loop_body
    %s15 = ssub.s32 %s10, 1
    %s16 = ssub.s32 %s10, 2
    %s23 = sadd.s32 1, %s18
    %p24 = scmp.ge.s32.totalorder %s23, 2
    %s25 = scalar_select %p24, 0, %s23
    %s26 = sadd.s32 1, %s17
    %s27 = scalar_select %p24, %s26, %s17
    %p28 = scmp.ge.s32.totalorder %s27, 1
    %s29 = scalar_select %p28, 0, %s27
    %s30 = ssub.s32 %s18, %s25
    %s31 = ssub.s32 %s17, %s29
    %s32 = sor.u32 %s30, %s31
    %p33 = scmp.eq.s32.totalorder %s32, 0
    %s35 = sadd.s32 %s34, 1
    %s36 = scalar_select %p33, %s34, %s35
    %p39 = pneg %p33
    %p40 = scmp.eq.s32.totalorder %s10, 1
    %p41 = por %p39, %p40
    %p42 = scmp.ne.s32.totalorder %s34, %s37
    %p43 = scmp.eq.s32.totalorder %s10, 0
    %p44 = por %p42, %p43
    %p45 = scmp.ne.s32.totalorder %s34, %s37
    %p46 = scmp.eq.s32.totalorder %s15, 1
    %p47 = por %p45, %p46
    %p48 = scmp.ne.s32.totalorder %s37, %s38
    %p49 = scmp.eq.s32.totalorder %s15, 0
    %p50 = por %p48, %p49
    %p51 = scmp.ne.s32.totalorder %s37, %s38
    %p52 = scmp.eq.s32.totalorder %s16, 1
    %p53 = por %p51, %p52
    %p55 = scmp.ne.s32.totalorder %s38, %s54
    %p56 = scmp.eq.s32.totalorder %s16, 0
    %p57 = por %p55, %p56
    %s58 = sadd.s32 %s17, 1
    %s59 = smul.u32 %s58, 8
    %s60 = sadd.s32 %s29, 1
    %s61 = smul.u32 %s60, 8
    %s62 = ssub.s32 %s18, %s25
    %s63 = ssub.s32 %s59, %s61
    %s64 = sor.u32 %s62, %s63
    %p65 = scmp.eq.s32.totalorder %s64, 0
    %s67 = sadd.s32 %s66, 1
    %s68 = scalar_select %p65, %s66, %s67
    %p71 = pneg %p65
    %p72 = scmp.eq.s32.totalorder %s10, 1
    %p73 = por %p71, %p72
    %p74 = scmp.ne.s32.totalorder %s66, %s69
    %p75 = scmp.eq.s32.totalorder %s10, 0
    %p76 = por %p74, %p75
    %p77 = scmp.ne.s32.totalorder %s66, %s69
    %p78 = scmp.eq.s32.totalorder %s15, 1
    %p79 = por %p77, %p78
    %p80 = scmp.ne.s32.totalorder %s69, %s70
    %p81 = scmp.eq.s32.totalorder %s15, 0
    %p82 = por %p80, %p81
    %p83 = scmp.ne.s32.totalorder %s69, %s70
    %p84 = scmp.eq.s32.totalorder %s16, 1
    %p85 = por %p83, %p84
    %p87 = scmp.ne.s32.totalorder %s70, %s86
    %p88 = scmp.eq.s32.totalorder %s16, 0
    %p89 = por %p87, %p88
    %s91 = sadd.s32 %s90, 1
    %p94 = scmp.eq.s32.totalorder %s10, 1
    %p95 = scmp.ne.s32.totalorder %s90, %s92
    %p96 = scmp.eq.s32.totalorder %s10, 0
    %p97 = por %p95, %p96
    %p98 = scmp.ne.s32.totalorder %s90, %s92
    %p99 = scmp.eq.s32.totalorder %s15, 1
    %p100 = por %p98, %p99
    %p101 = scmp.ne.s32.totalorder %s92, %s93
    %p102 = scmp.eq.s32.totalorder %s15, 0
    %p103 = por %p101, %p102
    %p104 = scmp.ne.s32.totalorder %s92, %s93
    %p105 = scmp.eq.s32.totalorder %s16, 1
    %p106 = por %p104, %p105
    %p108 = scmp.ne.s32.totalorder %s93, %s107
    %p109 = scmp.eq.s32.totalorder %s16, 0
    %p110 = por %p108, %p109
    %s112 = sadd.s32 %s111, 1
    %p115 = scmp.eq.s32.totalorder %s10, 1
    %p116 = scmp.ne.s32.totalorder %s111, %s113
    %p117 = scmp.eq.s32.totalorder %s10, 0
    %p118 = por %p116, %p117
    %p119 = scmp.ne.s32.totalorder %s111, %s113
    %p120 = scmp.eq.s32.totalorder %s15, 1
    %p121 = por %p119, %p120
    %p122 = scmp.ne.s32.totalorder %s113, %s114
    %p123 = scmp.eq.s32.totalorder %s15, 0
    %p124 = por %p122, %p123
    %p125 = scmp.ne.s32.totalorder %s113, %s114
    %p126 = scmp.eq.s32.totalorder %s16, 1
    %p127 = por %p125, %p126
    %p129 = scmp.ne.s32.totalorder %s114, %s128
    %p130 = scmp.eq.s32.totalorder %s16, 0
    %p131 = por %p129, %p130
    %s132 = ssub.s32 %s18, %s25
    %s133 = ssub.s32 %s17, %s29
    %s134 = sor.u32 %s132, %s133
    %p135 = scmp.eq.s32.totalorder %s134, 0
    %s137 = sadd.s32 %s136, 1
    %s138 = scalar_select %p135, %s136, %s137
    %p141 = pneg %p135
    %p142 = scmp.eq.s32.totalorder %s10, 1
    %p143 = por %p141, %p142
    %p144 = scmp.ne.s32.totalorder %s136, %s139
    %p145 = scmp.eq.s32.totalorder %s10, 0
    %p146 = por %p144, %p145
    %p147 = scmp.ne.s32.totalorder %s136, %s139
    %p148 = scmp.eq.s32.totalorder %s15, 1
    %p149 = por %p147, %p148
    %p150 = scmp.ne.s32.totalorder %s139, %s140
    %p151 = scmp.eq.s32.totalorder %s15, 0
    %p152 = por %p150, %p151
    %p153 = scmp.ne.s32.totalorder %s139, %s140
    %p154 = scmp.eq.s32.totalorder %s16, 1
    %p155 = por %p153, %p154
    %p157 = scmp.ne.s32.totalorder %s140, %s156
    %p158 = scmp.eq.s32.totalorder %s16, 0
    %p159 = por %p157, %p158
    %p160 = scmp.le.s32.totalorder 1, %s10
    %p161 = scmp.lt.s32.totalorder %s10, 3
    %p162 = pnand %p160, %p161
    %p163 = pneg %p162
    // Predicated region
    $region9: #{tpu_custom_call.1} parent=5 // pred_check
      _
    $region10: #{tpu_custom_call.1} parent=5 // pred_check_branch
      %165 = sbr.rel (%p162) target = $region12
    $region11: #{tpu_custom_call.1} parent=5 // pred_region
      %s166 = ssub.s32 %s10, 1
      // Predicated region
      $region13: #{tpu_custom_call.1} parent=11 // pred_check
        %p167 = pneg %p103
      $region14: #{tpu_custom_call.1} parent=11 // pred_check_branch
        %169 = sbr.rel (%p167) target = $region16
      $region15: #{tpu_custom_call.1} parent=11 // pred_region
        _
      $region16: #{tpu_custom_call.1} parent=11 // pred_fallthru
        _
      // Predicated region
      $region17: #{tpu_custom_call.1} parent=11 // pred_check
        %p170 = pneg %p124
      $region18: #{tpu_custom_call.1} parent=11 // pred_check_branch
        %172 = sbr.rel (%p170) target = $region20
      $region19: #{tpu_custom_call.1} parent=11 // pred_region
        _
      $region20: #{tpu_custom_call.1} parent=11 // pred_fallthru
        _
    $region12: #{tpu_custom_call.1} parent=5 // pred_fallthru
      _
    %p173 = scmp.lt.s32.totalorder %s10, 2
    // Predicated region
    $region21: #{tpu_custom_call.1} parent=5 // pred_check
      %p174 = pneg %p173
    $region22: #{tpu_custom_call.1} parent=5 // pred_check_branch
      %176 = sbr.rel (%p174) target = $region24
    $region23: #{tpu_custom_call.1} parent=5 // pred_region
      // Predicated region
      $region25: #{tpu_custom_call.1} parent=23 // pred_check
        %p177 = pneg %p44
      $region26: #{tpu_custom_call.1} parent=23 // pred_check_branch
        %179 = sbr.rel (%p177) target = $region28
      $region27: #{tpu_custom_call.1} parent=23 // pred_region
        %s180 = smul.u32 16, %s17
        %s181 = ssub.s32 18, %s180
        %p182 = scmp.lt.s32.totalorder %s181, 16
        %s183 = scalar_select %p182, %s181, 16
        %s184 = smul.u32 4, %s183
        %s185 = smul.u32 %s184, 3
        %p186 = scmp.lt.s32.totalorder %s18, 1
        %s187 = scalar_select %p186, %s18, 1
        %p188 = scmp.lt.s32.totalorder %s180, 17
        %s189 = scalar_select %p188, %s180, 17
        %s190 = smul.addr %s189, 3
        %s191 = smul.addr %s187, 54
        %s192 = sadd.s32 %s190, %s191
        %s193 = smul.addr %s192, 4
        %s194 = scalar_lea.vmem %s0, %s193
        %s195 = smul.u32 16, %s17
        %s196 = ssub.s32 18, %s195
        %p197 = scmp.lt.s32.totalorder %s196, 16
        %s198 = scalar_select %p197, %s196, 16
        %s199 = smul.u32 4, %s198
        %s200 = smul.u32 %s199, 3
      $region28: #{tpu_custom_call.1} parent=23 // pred_fallthru
        _
      // Predicated region
      $region29: #{tpu_custom_call.1} parent=23 // pred_check
        %p201 = pneg %p76
      $region30: #{tpu_custom_call.1} parent=23 // pred_check_branch
        %203 = sbr.rel (%p201) target = $region32
      $region31: #{tpu_custom_call.1} parent=23 // pred_region
        %s204 = sadd.s32 %s17, 1
        %s205 = smul.u32 %s204, 8
        %s206 = smul.u32 2, %s205
        %p207 = scmp.lt.s32.totalorder %s18, 1
        %s208 = scalar_select %p207, %s18, 1
        %p209 = scmp.lt.s32.totalorder %s206, 17
        %s210 = scalar_select %p209, %s206, 17
        %s211 = smul.addr %s210, 3
        %s212 = smul.addr %s208, 54
        %s213 = sadd.s32 %s211, %s212
        %s214 = smul.addr %s213, 4
        %s215 = scalar_lea.vmem %s1, %s214
        %s216 = sadd.s32 %s17, 1
        %s217 = smul.u32 %s216, 8
        %s218 = smul.u32 2, %s217
      $region32: #{tpu_custom_call.1} parent=23 // pred_fallthru
        _
    $region24: #{tpu_custom_call.1} parent=5 // pred_fallthru
      _
    %p219 = scmp.le.s32.totalorder 1, %s10
    %p220 = scmp.lt.s32.totalorder %s10, 3
    %p221 = pnand %p219, %p220
    %p222 = pneg %p221
    // Predicated region
    $region33: #{tpu_custom_call.1} parent=5 // pred_check
      _
    $region34: #{tpu_custom_call.1} parent=5 // pred_check_branch
      %224 = sbr.rel (%p221) target = $region36
    $region35: #{tpu_custom_call.1} parent=5 // pred_region
      %s225 = ssub.s32 %s10, 1
      %s226 = smul.u32 16, %s19
      %s227 = ssub.s32 18, %s226
      %p228 = scmp.lt.s32.totalorder %s227, 16
      %s229 = scalar_select %p228, %s227, 16
      %s230 = smul.u32 4, %s229
      %s231 = smul.u32 %s230, 3
      %p232 = scmp.lt.s32.totalorder %s20, 1
      %s233 = scalar_select %p232, %s20, 1
      %p234 = scmp.lt.s32.totalorder %s226, 17
      %s235 = scalar_select %p234, %s226, 17
      %s236 = smul.addr %s235, 3
      %s237 = smul.addr %s233, 54
      %s238 = sadd.s32 %s236, %s237
      %s239 = smul.addr %s238, 4
      %s240 = scalar_lea.vmem %s0, %s239
      %p241 = pneg %p50
      %p242 = pneg %p47
      %s243 = sadd.s32 %s19, 1
      %s244 = smul.u32 %s243, 8
      %s245 = smul.u32 2, %s244
      %p246 = scmp.lt.s32.totalorder %s20, 1
      %s247 = scalar_select %p246, %s20, 1
      %p248 = scmp.lt.s32.totalorder %s245, 17
      %s249 = scalar_select %p248, %s245, 17
      %s250 = smul.addr %s249, 3
      %s251 = smul.addr %s247, 54
      %s252 = sadd.s32 %s250, %s251
      %s253 = smul.addr %s252, 4
      %s254 = scalar_lea.vmem %s1, %s253
      %p255 = pneg %p82
      %p256 = pneg %p79
      %p257 = pneg %p103
      %p258 = pneg %p100
      %p259 = pneg %p124
      %p260 = pneg %p121
      %p261 = pneg %p152
      %p262 = pneg %p149
      %s263 = smul.u32 2, %s19
      %p264 = scmp.lt.s32.totalorder %s20, 1
      %s265 = scalar_select %p264, %s20, 1
      %p266 = scmp.lt.s32.totalorder %s263, 1
      %s267 = scalar_select %p266, %s263, 1
      %s268 = smul.addr %s265, 6
      %s269 = sadd.s32 %s267, %s268
      %s270 = smul.addr %s269, 8
      %s271 = scalar_lea.vmem %s4, %s270
      %s272 = smul.u32 16, %s19
      %s273 = ssub.s32 18, %s272
      %p274 = scmp.lt.s32.totalorder %s273, 16
      %s275 = scalar_select %p274, %s273, 16
      %s276 = smul.u32 4, %s275
      %s277 = smul.u32 %s276, 3
      %p278 = scmp.lt.s32.totalorder %s20, 1
      %s279 = scalar_select %p278, %s20, 1
      %p280 = scmp.lt.s32.totalorder %s272, 17
      %s281 = scalar_select %p280, %s272, 17
      %s282 = smul.addr %s281, 3
      %s283 = smul.addr %s279, 54
      %s284 = sadd.s32 %s282, %s283
      %s285 = smul.addr %s284, 4
      %s286 = scalar_lea.vmem %s0, %s285
      %s287 = smul.u32 16, %s19
      %s288 = ssub.s32 18, %s287
      %p289 = scmp.lt.s32.totalorder %s288, 16
      %s290 = scalar_select %p289, %s288, 16
      %s291 = smul.u32 4, %s290
      %s292 = smul.u32 %s291, 3
      %s293 = sadd.s32 %s19, 1
      %s294 = smul.u32 %s293, 8
      %s295 = smul.u32 2, %s294
      %p296 = scmp.lt.s32.totalorder %s20, 1
      %s297 = scalar_select %p296, %s20, 1
      %p298 = scmp.lt.s32.totalorder %s295, 17
      %s299 = scalar_select %p298, %s295, 17
      %s300 = smul.addr %s299, 3
      %s301 = smul.addr %s297, 54
      %s302 = sadd.s32 %s300, %s301
      %s303 = smul.addr %s302, 4
      %s304 = scalar_lea.vmem %s1, %s303
      %s305 = sadd.s32 %s19, 1
      %s306 = smul.u32 %s305, 8
      %s307 = smul.u32 2, %s306
      %s308 = smul.u32 2, %s19
      %p309 = scmp.lt.s32.totalorder %s20, 1
      %s310 = scalar_select %p309, %s20, 1
      %p311 = scmp.lt.s32.totalorder %s308, 1
      %s312 = scalar_select %p311, %s308, 1
      %s313 = smul.addr %s310, 6
      %s314 = sadd.s32 %s312, %s313
      %s315 = smul.addr %s314, 8
      %s316 = scalar_lea.vmem %s4, %s315
      %s317 = smul.u32 2, %s19
      %v319 = vld [vmem:[%s286] sm:$0xf]
      %v320 = vld [vmem:[%s286 + $0x4] sm:$0xf]
      %v321 = vld [vmem:[%s286 + $0x8] sm:$0x1]
      %v322 = vld [vmem:[%s286 + $0xc] sm:$0xf]
      %v323 = vld [vmem:[%s286 + $0x10] sm:$0xf]
      %v324 = vld [vmem:[%s286 + $0x14] sm:$0x1]
      %v325 = vld [vmem:[%s286 + $0x18] sm:$0xf]
      %v326 = vld [vmem:[%s286 + $0x1c] sm:$0xf]
      %v327 = vld [vmem:[%s286 + $0x20] sm:$0x1]
      %v328 = vld [vmem:[%s286 + $0x24] sm:$0xf]
      %v329 = vld [vmem:[%s286 + $0x28] sm:$0xf]
      %v330 = vld [vmem:[%s286 + $0x2c] sm:$0x1]
      %v331 = vld [vmem:[%s286 + $0x30] sm:$0xf]
      %v332 = vld [vmem:[%s286 + $0x34] sm:$0xf]
      %v333 = vld [vmem:[%s286 + $0x38] sm:$0x1]
      %v334 = vld [vmem:[%s286 + $0x3c] sm:$0xf]
      %v335 = vld [vmem:[%s286 + $0x40] sm:$0xf]
      %v336 = vld [vmem:[%s286 + $0x44] sm:$0x1]
      %v337 = vld [vmem:[%s286 + $0x48] sm:$0xf]
      %v338 = vld [vmem:[%s286 + $0x4c] sm:$0xf]
      %v339 = vld [vmem:[%s286 + $0x50] sm:$0x1]
      %v340 = vld [vmem:[%s286 + $0x54] sm:$0xf]
      %v341 = vld [vmem:[%s286 + $0x58] sm:$0xf]
      %v342 = vld [vmem:[%s286 + $0x5c] sm:$0x1]
      %v343 = vld [vmem:[%s286 + $0x60] sm:$0xf]
      %v344 = vld [vmem:[%s286 + $0x64] sm:$0xf]
      %v345 = vld [vmem:[%s286 + $0x68] sm:$0x1]
      %v346 = vld [vmem:[%s286 + $0x6c] sm:$0xf]
      %v347 = vld [vmem:[%s286 + $0x70] sm:$0xf]
      %v348 = vld [vmem:[%s286 + $0x74] sm:$0x1]
      %v349 = vld [vmem:[%s286 + $0x78] sm:$0xf]
      %v350 = vld [vmem:[%s286 + $0x7c] sm:$0xf]
      %v351 = vld [vmem:[%s286 + $0x80] sm:$0x1]
      %v352 = vld [vmem:[%s286 + $0x84] sm:$0xf]
      %v353 = vld [vmem:[%s286 + $0x88] sm:$0xf]
      %v354 = vld [vmem:[%s286 + $0x8c] sm:$0x1]
      %v355 = vld [vmem:[%s286 + $0x90] sm:$0xf]
      %v356 = vld [vmem:[%s286 + $0x94] sm:$0xf]
      %v357 = vld [vmem:[%s286 + $0x98] sm:$0x1]
      %v358 = vld [vmem:[%s286 + $0x9c] sm:$0xf]
      %v359 = vld [vmem:[%s286 + $0xa0] sm:$0xf]
      %v360 = vld [vmem:[%s286 + $0xa4] sm:$0x1]
      %v361 = vld [vmem:[%s286 + $0xa8] sm:$0xf]
      %v362 = vld [vmem:[%s286 + $0xac] sm:$0xf]
      %v363 = vld [vmem:[%s286 + $0xb0] sm:$0x1]
      %v364 = vld [vmem:[%s286 + $0xb4] sm:$0xf]
      %v365 = vld [vmem:[%s286 + $0xb8] sm:$0xf]
      %v366 = vld [vmem:[%s286 + $0xbc] sm:$0x1]
      %v367 = vld [vmem:[%s304] sm:$0xf]
      %v368 = vld [vmem:[%s304 + $0x4] sm:$0xf]
      %v369 = vld [vmem:[%s304 + $0x8] sm:$0x1]
      %v370 = vld [vmem:[%s304 + $0xc] sm:$0xf]
      %v371 = vld [vmem:[%s304 + $0x10] sm:$0xf]
      %v372 = vld [vmem:[%s304 + $0x14] sm:$0x1]
      %v405 = vunpack.c.l.b16 %v319
      %v406 = vunpack.c.l.b16 %v320
      %v407 = vunpack.c.l.b16 %v322
      %v408 = vunpack.c.l.b16 %v323
      %v409 = vunpack.c.l.b16 %v325
      %v410 = vunpack.c.l.b16 %v326
      %v411 = vunpack.c.l.b16 %v328
      %v412 = vunpack.c.l.b16 %v329
      %v413 = vunpack.c.l.b16 %v331
      %v414 = vunpack.c.l.b16 %v332
      %v415 = vunpack.c.l.b16 %v334
      %v416 = vunpack.c.l.b16 %v335
      %v417 = vunpack.c.l.b16 %v337
      %v418 = vunpack.c.l.b16 %v338
      %v419 = vunpack.c.l.b16 %v340
      %v420 = vunpack.c.l.b16 %v341
      %v421 = vunpack.c.l.b16 %v343
      %v422 = vunpack.c.l.b16 %v344
      %v423 = vunpack.c.l.b16 %v346
      %v424 = vunpack.c.l.b16 %v347
      %v425 = vunpack.c.l.b16 %v349
      %v426 = vunpack.c.l.b16 %v350
      %v427 = vunpack.c.l.b16 %v352
      %v428 = vunpack.c.l.b16 %v353
      %v429 = vunpack.c.l.b16 %v355
      %v430 = vunpack.c.l.b16 %v356
      %v431 = vunpack.c.l.b16 %v358
      %v432 = vunpack.c.l.b16 %v359
      %v433 = vunpack.c.l.b16 %v361
      %v434 = vunpack.c.l.b16 %v362
      %v435 = vunpack.c.l.b16 %v364
      %v436 = vunpack.c.l.b16 %v365
      %v437 = vpack.c.b16 %v406, %v405
      %v438 = vpack.c.b16 %v408, %v407
      %v439 = vpack.c.b16 %v410, %v409
      %v440 = vpack.c.b16 %v412, %v411
      %v441 = vpack.c.b16 %v414, %v413
      %v442 = vpack.c.b16 %v416, %v415
      %v443 = vpack.c.b16 %v418, %v417
      %v444 = vpack.c.b16 %v420, %v419
      %v445 = vpack.c.b16 %v422, %v421
      %v446 = vpack.c.b16 %v424, %v423
      %v447 = vpack.c.b16 %v426, %v425
      %v448 = vpack.c.b16 %v428, %v427
      %v449 = vpack.c.b16 %v430, %v429
      %v450 = vpack.c.b16 %v432, %v431
      %v451 = vpack.c.b16 %v434, %v433
      %v452 = vpack.c.b16 %v436, %v435
      %v469 = vunpack.c.l.b16 %v321
      %v470 = vunpack.c.l.b16 %v324
      %v471 = vunpack.c.l.b16 %v327
      %v472 = vunpack.c.l.b16 %v330
      %v473 = vunpack.c.l.b16 %v333
      %v474 = vunpack.c.l.b16 %v336
      %v475 = vunpack.c.l.b16 %v339
      %v476 = vunpack.c.l.b16 %v342
      %v477 = vunpack.c.l.b16 %v345
      %v478 = vunpack.c.l.b16 %v348
      %v479 = vunpack.c.l.b16 %v351
      %v480 = vunpack.c.l.b16 %v354
      %v481 = vunpack.c.l.b16 %v357
      %v482 = vunpack.c.l.b16 %v360
      %v483 = vunpack.c.l.b16 %v363
      %v484 = vunpack.c.l.b16 %v366
      %v485 = vpack.c.b16 %v469, %v469
      %v486 = vpack.c.b16 %v470, %v470
      %v487 = vpack.c.b16 %v471, %v471
      %v488 = vpack.c.b16 %v472, %v472
      %v489 = vpack.c.b16 %v473, %v473
      %v490 = vpack.c.b16 %v474, %v474
      %v491 = vpack.c.b16 %v475, %v475
      %v492 = vpack.c.b16 %v476, %v476
      %v493 = vpack.c.b16 %v477, %v477
      %v494 = vpack.c.b16 %v478, %v478
      %v495 = vpack.c.b16 %v479, %v479
      %v496 = vpack.c.b16 %v480, %v480
      %v497 = vpack.c.b16 %v481, %v481
      %v498 = vpack.c.b16 %v482, %v482
      %v499 = vpack.c.b16 %v483, %v483
      %v500 = vpack.c.b16 %v484, %v484
      %vm501 = vsmask.f32 7424
      %v503 = vshrl.u32 %v437, 16
      %v505 = vshll.u32 %v437, 16
      %v507 = vrot.slane %v505, 1
      %v508 = vor.u32 %v503, %v507
      %v510 = vshll.u32 %v485, 16
      %v512 = vrot.slane %v510, 1
      %v513 = vsel %vm501, %v508, %v512
      %v515 = vshrl.u32 %v438, 16
      %v517 = vshll.u32 %v438, 16
      %v519 = vrot.slane %v517, 1
      %v520 = vor.u32 %v515, %v519
      %v522 = vshll.u32 %v486, 16
      %v524 = vrot.slane %v522, 1
      %v525 = vsel %vm501, %v520, %v524
      %v527 = vshrl.u32 %v439, 16
      %v529 = vshll.u32 %v439, 16
      %v531 = vrot.slane %v529, 1
      %v532 = vor.u32 %v527, %v531
      %v534 = vshll.u32 %v487, 16
      %v536 = vrot.slane %v534, 1
      %v537 = vsel %vm501, %v532, %v536
      %v539 = vshrl.u32 %v440, 16
      %v541 = vshll.u32 %v440, 16
      %v543 = vrot.slane %v541, 1
      %v544 = vor.u32 %v539, %v543
      %v546 = vshll.u32 %v488, 16
      %v548 = vrot.slane %v546, 1
      %v549 = vsel %vm501, %v544, %v548
      %v551 = vshrl.u32 %v441, 16
      %v553 = vshll.u32 %v441, 16
      %v555 = vrot.slane %v553, 1
      %v556 = vor.u32 %v551, %v555
      %v558 = vshll.u32 %v489, 16
      %v560 = vrot.slane %v558, 1
      %v561 = vsel %vm501, %v556, %v560
      %v563 = vshrl.u32 %v442, 16
      %v565 = vshll.u32 %v442, 16
      %v567 = vrot.slane %v565, 1
      %v568 = vor.u32 %v563, %v567
      %v570 = vshll.u32 %v490, 16
      %v572 = vrot.slane %v570, 1
      %v573 = vsel %vm501, %v568, %v572
      %v575 = vshrl.u32 %v443, 16
      %v577 = vshll.u32 %v443, 16
      %v579 = vrot.slane %v577, 1
      %v580 = vor.u32 %v575, %v579
      %v582 = vshll.u32 %v491, 16
      %v584 = vrot.slane %v582, 1
      %v585 = vsel %vm501, %v580, %v584
      %v587 = vshrl.u32 %v444, 16
      %v589 = vshll.u32 %v444, 16
      %v591 = vrot.slane %v589, 1
      %v592 = vor.u32 %v587, %v591
      %v594 = vshll.u32 %v492, 16
      %v596 = vrot.slane %v594, 1
      %v597 = vsel %vm501, %v592, %v596
      %v599 = vshrl.u32 %v445, 16
      %v601 = vshll.u32 %v445, 16
      %v603 = vrot.slane %v601, 1
      %v604 = vor.u32 %v599, %v603
      %v606 = vshll.u32 %v493, 16
      %v608 = vrot.slane %v606, 1
      %v609 = vsel %vm501, %v604, %v608
      %v611 = vshrl.u32 %v446, 16
      %v613 = vshll.u32 %v446, 16
      %v615 = vrot.slane %v613, 1
      %v616 = vor.u32 %v611, %v615
      %v618 = vshll.u32 %v494, 16
      %v620 = vrot.slane %v618, 1
      %v621 = vsel %vm501, %v616, %v620
      %v623 = vshrl.u32 %v447, 16
      %v625 = vshll.u32 %v447, 16
      %v627 = vrot.slane %v625, 1
      %v628 = vor.u32 %v623, %v627
      %v630 = vshll.u32 %v495, 16
      %v632 = vrot.slane %v630, 1
      %v633 = vsel %vm501, %v628, %v632
      %v635 = vshrl.u32 %v448, 16
      %v637 = vshll.u32 %v448, 16
      %v639 = vrot.slane %v637, 1
      %v640 = vor.u32 %v635, %v639
      %v642 = vshll.u32 %v496, 16
      %v644 = vrot.slane %v642, 1
      %v645 = vsel %vm501, %v640, %v644
      %v647 = vshrl.u32 %v449, 16
      %v649 = vshll.u32 %v449, 16
      %v651 = vrot.slane %v649, 1
      %v652 = vor.u32 %v647, %v651
      %v654 = vshll.u32 %v497, 16
      %v656 = vrot.slane %v654, 1
      %v657 = vsel %vm501, %v652, %v656
      %v659 = vshrl.u32 %v450, 16
      %v661 = vshll.u32 %v450, 16
      %v663 = vrot.slane %v661, 1
      %v664 = vor.u32 %v659, %v663
      %v666 = vshll.u32 %v498, 16
      %v668 = vrot.slane %v666, 1
      %v669 = vsel %vm501, %v664, %v668
      %v671 = vshrl.u32 %v451, 16
      %v673 = vshll.u32 %v451, 16
      %v675 = vrot.slane %v673, 1
      %v676 = vor.u32 %v671, %v675
      %v678 = vshll.u32 %v499, 16
      %v680 = vrot.slane %v678, 1
      %v681 = vsel %vm501, %v676, %v680
      %v683 = vshrl.u32 %v452, 16
      %v685 = vshll.u32 %v452, 16
      %v687 = vrot.slane %v685, 1
      %v688 = vor.u32 %v683, %v687
      %v690 = vshll.u32 %v500, 16
      %v692 = vrot.slane %v690, 1
      %v693 = vsel %vm501, %v688, %v692
      %694 = vrot.lane.b32.xlu0 %v513, 32
      %v695 = vpop.permute.xlu0 %694
      %696 = vrot.lane.b32.xlu0 %v525, 32
      %v697 = vpop.permute.xlu0 %696
      %698 = vrot.lane.b32.xlu0 %v537, 32
      %v699 = vpop.permute.xlu0 %698
      %700 = vrot.lane.b32.xlu0 %v549, 32
      %v701 = vpop.permute.xlu0 %700
      %702 = vrot.lane.b32.xlu0 %v561, 32
      %v703 = vpop.permute.xlu0 %702
      %704 = vrot.lane.b32.xlu0 %v573, 32
      %v705 = vpop.permute.xlu0 %704
      %706 = vrot.lane.b32.xlu0 %v585, 32
      %v707 = vpop.permute.xlu0 %706
      %708 = vrot.lane.b32.xlu0 %v597, 32
      %v709 = vpop.permute.xlu0 %708
      %710 = vrot.lane.b32.xlu0 %v609, 32
      %v711 = vpop.permute.xlu0 %710
      %712 = vrot.lane.b32.xlu0 %v621, 32
      %v713 = vpop.permute.xlu0 %712
      %714 = vrot.lane.b32.xlu0 %v633, 32
      %v715 = vpop.permute.xlu0 %714
      %716 = vrot.lane.b32.xlu0 %v645, 32
      %v717 = vpop.permute.xlu0 %716
      %718 = vrot.lane.b32.xlu0 %v657, 32
      %v719 = vpop.permute.xlu0 %718
      %720 = vrot.lane.b32.xlu0 %v669, 32
      %v721 = vpop.permute.xlu0 %720
      %722 = vrot.lane.b32.xlu0 %v681, 32
      %v723 = vpop.permute.xlu0 %722
      %724 = vrot.lane.b32.xlu0 %v693, 32
      %v725 = vpop.permute.xlu0 %724
      %vm726 = vcmask 1046528
      %v727 = vrot.slane %v437, 1
      %v728 = vrot.slane %v485, 1
      %v729 = vsel %vm726, %v727, %v728
      %v730 = vrot.slane %v438, 1
      %v731 = vrot.slane %v486, 1
      %v732 = vsel %vm726, %v730, %v731
      %v733 = vrot.slane %v439, 1
      %v734 = vrot.slane %v487, 1
      %v735 = vsel %vm726, %v733, %v734
      %v736 = vrot.slane %v440, 1
      %v737 = vrot.slane %v488, 1
      %v738 = vsel %vm726, %v736, %v737
      %v739 = vrot.slane %v441, 1
      %v740 = vrot.slane %v489, 1
      %v741 = vsel %vm726, %v739, %v740
      %v742 = vrot.slane %v442, 1
      %v743 = vrot.slane %v490, 1
      %v744 = vsel %vm726, %v742, %v743
      %v745 = vrot.slane %v443, 1
      %v746 = vrot.slane %v491, 1
      %v747 = vsel %vm726, %v745, %v746
      %v748 = vrot.slane %v444, 1
      %v749 = vrot.slane %v492, 1
      %v750 = vsel %vm726, %v748, %v749
      %v751 = vrot.slane %v445, 1
      %v752 = vrot.slane %v493, 1
      %v753 = vsel %vm726, %v751, %v752
      %v754 = vrot.slane %v446, 1
      %v755 = vrot.slane %v494, 1
      %v756 = vsel %vm726, %v754, %v755
      %v757 = vrot.slane %v447, 1
      %v758 = vrot.slane %v495, 1
      %v759 = vsel %vm726, %v757, %v758
      %v760 = vrot.slane %v448, 1
      %v761 = vrot.slane %v496, 1
      %v762 = vsel %vm726, %v760, %v761
      %v763 = vrot.slane %v449, 1
      %v764 = vrot.slane %v497, 1
      %v765 = vsel %vm726, %v763, %v764
      %v766 = vrot.slane %v450, 1
      %v767 = vrot.slane %v498, 1
      %v768 = vsel %vm726, %v766, %v767
      %v769 = vrot.slane %v451, 1
      %v770 = vrot.slane %v499, 1
      %v771 = vsel %vm726, %v769, %v770
      %v772 = vrot.slane %v452, 1
      %v773 = vrot.slane %v500, 1
      %v774 = vsel %vm726, %v772, %v773
      %775 = vrot.lane.b32.xlu0 %v729, 64
      %v776 = vpop.permute.xlu0 %775
      %777 = vrot.lane.b32.xlu0 %v732, 64
      %v778 = vpop.permute.xlu0 %777
      %779 = vrot.lane.b32.xlu0 %v735, 64
      %v780 = vpop.permute.xlu0 %779
      %781 = vrot.lane.b32.xlu0 %v738, 64
      %v782 = vpop.permute.xlu0 %781
      %783 = vrot.lane.b32.xlu0 %v741, 64
      %v784 = vpop.permute.xlu0 %783
      %785 = vrot.lane.b32.xlu0 %v744, 64
      %v786 = vpop.permute.xlu0 %785
      %787 = vrot.lane.b32.xlu0 %v747, 64
      %v788 = vpop.permute.xlu0 %787
      %789 = vrot.lane.b32.xlu0 %v750, 64
      %v790 = vpop.permute.xlu0 %789
      %791 = vrot.lane.b32.xlu0 %v753, 64
      %v792 = vpop.permute.xlu0 %791
      %793 = vrot.lane.b32.xlu0 %v756, 64
      %v794 = vpop.permute.xlu0 %793
      %795 = vrot.lane.b32.xlu0 %v759, 64
      %v796 = vpop.permute.xlu0 %795
      %797 = vrot.lane.b32.xlu0 %v762, 64
      %v798 = vpop.permute.xlu0 %797
      %799 = vrot.lane.b32.xlu0 %v765, 64
      %v800 = vpop.permute.xlu0 %799
      %801 = vrot.lane.b32.xlu0 %v768, 64
      %v802 = vpop.permute.xlu0 %801
      %803 = vrot.lane.b32.xlu0 %v771, 64
      %v804 = vpop.permute.xlu0 %803
      %805 = vrot.lane.b32.xlu0 %v774, 64
      %v806 = vpop.permute.xlu0 %805
      %v809 = vunpack.c.l.b16 %v367
      %v810 = vunpack.c.l.b16 %v368
      %v811 = vpack.c.b16 %v810, %v809
      %812 = vrot.lane.b32.xlu0 %v438, 96
      %v813 = vpop.permute.xlu0 %812
      %814 = vrot.lane.b32.xlu0 %v439, 96
      %v815 = vpop.permute.xlu0 %814
      %816 = vrot.lane.b32.xlu0 %v440, 96
      %v817 = vpop.permute.xlu0 %816
      %818 = vrot.lane.b32.xlu0 %v441, 96
      %v819 = vpop.permute.xlu0 %818
      %820 = vrot.lane.b32.xlu0 %v442, 96
      %v821 = vpop.permute.xlu0 %820
      %822 = vrot.lane.b32.xlu0 %v443, 96
      %v823 = vpop.permute.xlu0 %822
      %824 = vrot.lane.b32.xlu0 %v444, 96
      %v825 = vpop.permute.xlu0 %824
      %826 = vrot.lane.b32.xlu0 %v445, 96
      %v827 = vpop.permute.xlu0 %826
      %828 = vrot.lane.b32.xlu0 %v446, 96
      %v829 = vpop.permute.xlu0 %828
      %830 = vrot.lane.b32.xlu0 %v447, 96
      %v831 = vpop.permute.xlu0 %830
      %832 = vrot.lane.b32.xlu0 %v448, 96
      %v833 = vpop.permute.xlu0 %832
      %834 = vrot.lane.b32.xlu0 %v449, 96
      %v835 = vpop.permute.xlu0 %834
      %836 = vrot.lane.b32.xlu0 %v450, 96
      %v837 = vpop.permute.xlu0 %836
      %838 = vrot.lane.b32.xlu0 %v451, 96
      %v839 = vpop.permute.xlu0 %838
      %840 = vrot.lane.b32.xlu0 %v452, 96
      %v841 = vpop.permute.xlu0 %840
      %842 = vrot.lane.b32.xlu0 %v811, 96
      %v843 = vpop.permute.xlu0 %842
      %v845 = vunpack.c.l.b16 %v369
      %v846 = vpack.c.b16 %v845, %v845
      %v848 = vshrl.u32 %v811, 16
      %v850 = vshll.u32 %v811, 16
      %v852 = vrot.slane %v850, 1
      %v853 = vor.u32 %v848, %v852
      %v855 = vshll.u32 %v846, 16
      %v857 = vrot.slane %v855, 1
      %v858 = vsel %vm501, %v853, %v857
      %v859 = vrot.slane %v811, 1
      %v860 = vrot.slane %v846, 1
      %v861 = vsel %vm726, %v859, %v860
      %862 = vrot.lane.b32.xlu0 %v732, 32
      %v863 = vpop.permute.xlu0 %862
      %864 = vrot.lane.b32.xlu0 %v735, 32
      %v865 = vpop.permute.xlu0 %864
      %866 = vrot.lane.b32.xlu0 %v738, 32
      %v867 = vpop.permute.xlu0 %866
      %868 = vrot.lane.b32.xlu0 %v741, 32
      %v869 = vpop.permute.xlu0 %868
      %870 = vrot.lane.b32.xlu0 %v744, 32
      %v871 = vpop.permute.xlu0 %870
      %872 = vrot.lane.b32.xlu0 %v747, 32
      %v873 = vpop.permute.xlu0 %872
      %874 = vrot.lane.b32.xlu0 %v750, 32
      %v875 = vpop.permute.xlu0 %874
      %876 = vrot.lane.b32.xlu0 %v753, 32
      %v877 = vpop.permute.xlu0 %876
      %878 = vrot.lane.b32.xlu0 %v756, 32
      %v879 = vpop.permute.xlu0 %878
      %880 = vrot.lane.b32.xlu0 %v759, 32
      %v881 = vpop.permute.xlu0 %880
      %882 = vrot.lane.b32.xlu0 %v762, 32
      %v883 = vpop.permute.xlu0 %882
      %884 = vrot.lane.b32.xlu0 %v765, 32
      %v885 = vpop.permute.xlu0 %884
      %886 = vrot.lane.b32.xlu0 %v768, 32
      %v887 = vpop.permute.xlu0 %886
      %888 = vrot.lane.b32.xlu0 %v771, 32
      %v889 = vpop.permute.xlu0 %888
      %890 = vrot.lane.b32.xlu0 %v774, 32
      %v891 = vpop.permute.xlu0 %890
      %892 = vrot.lane.b32.xlu0 %v861, 32
      %v893 = vpop.permute.xlu0 %892
      %v896 = vunpack.c.l.b16 %v370
      %v897 = vunpack.c.l.b16 %v371
      %v898 = vpack.c.b16 %v897, %v896
      %899 = vrot.lane.b32.xlu0 %v439, 64
      %v900 = vpop.permute.xlu0 %899
      %901 = vrot.lane.b32.xlu0 %v440, 64
      %v902 = vpop.permute.xlu0 %901
      %903 = vrot.lane.b32.xlu0 %v441, 64
      %v904 = vpop.permute.xlu0 %903
      %905 = vrot.lane.b32.xlu0 %v442, 64
      %v906 = vpop.permute.xlu0 %905
      %907 = vrot.lane.b32.xlu0 %v443, 64
      %v908 = vpop.permute.xlu0 %907
      %909 = vrot.lane.b32.xlu0 %v444, 64
      %v910 = vpop.permute.xlu0 %909
      %911 = vrot.lane.b32.xlu0 %v445, 64
      %v912 = vpop.permute.xlu0 %911
      %913 = vrot.lane.b32.xlu0 %v446, 64
      %v914 = vpop.permute.xlu0 %913
      %915 = vrot.lane.b32.xlu0 %v447, 64
      %v916 = vpop.permute.xlu0 %915
      %917 = vrot.lane.b32.xlu0 %v448, 64
      %v918 = vpop.permute.xlu0 %917
      %919 = vrot.lane.b32.xlu0 %v449, 64
      %v920 = vpop.permute.xlu0 %919
      %921 = vrot.lane.b32.xlu0 %v450, 64
      %v922 = vpop.permute.xlu0 %921
      %923 = vrot.lane.b32.xlu0 %v451, 64
      %v924 = vpop.permute.xlu0 %923
      %925 = vrot.lane.b32.xlu0 %v452, 64
      %v926 = vpop.permute.xlu0 %925
      %927 = vrot.lane.b32.xlu0 %v811, 64
      %v928 = vpop.permute.xlu0 %927
      %929 = vrot.lane.b32.xlu0 %v898, 64
      %v930 = vpop.permute.xlu0 %929
      %v932 = vunpack.c.l.b16 %v372
      %v933 = vpack.c.b16 %v932, %v932
      %v935 = vshrl.u32 %v898, 16
      %v937 = vshll.u32 %v898, 16
      %v939 = vrot.slane %v937, 1
      %v940 = vor.u32 %v935, %v939
      %v942 = vshll.u32 %v933, 16
      %v944 = vrot.slane %v942, 1
      %v945 = vsel %vm501, %v940, %v944
      %946 = vrot.lane.b32.xlu0 %v537, 96
      %v947 = vpop.permute.xlu0 %946
      %948 = vrot.lane.b32.xlu0 %v549, 96
      %v949 = vpop.permute.xlu0 %948
      %950 = vrot.lane.b32.xlu0 %v561, 96
      %v951 = vpop.permute.xlu0 %950
      %952 = vrot.lane.b32.xlu0 %v573, 96
      %v953 = vpop.permute.xlu0 %952
      %954 = vrot.lane.b32.xlu0 %v585, 96
      %v955 = vpop.permute.xlu0 %954
      %956 = vrot.lane.b32.xlu0 %v597, 96
      %v957 = vpop.permute.xlu0 %956
      %958 = vrot.lane.b32.xlu0 %v609, 96
      %v959 = vpop.permute.xlu0 %958
      %960 = vrot.lane.b32.xlu0 %v621, 96
      %v961 = vpop.permute.xlu0 %960
      %962 = vrot.lane.b32.xlu0 %v633, 96
      %v963 = vpop.permute.xlu0 %962
      %964 = vrot.lane.b32.xlu0 %v645, 96
      %v965 = vpop.permute.xlu0 %964
      %966 = vrot.lane.b32.xlu0 %v657, 96
      %v967 = vpop.permute.xlu0 %966
      %968 = vrot.lane.b32.xlu0 %v669, 96
      %v969 = vpop.permute.xlu0 %968
      %970 = vrot.lane.b32.xlu0 %v681, 96
      %v971 = vpop.permute.xlu0 %970
      %972 = vrot.lane.b32.xlu0 %v693, 96
      %v973 = vpop.permute.xlu0 %972
      %974 = vrot.lane.b32.xlu0 %v858, 96
      %v975 = vpop.permute.xlu0 %974
      %976 = vrot.lane.b32.xlu0 %v945, 96
      %v977 = vpop.permute.xlu0 %976
      %v978 = vrot.slane %v898, 1
      %v979 = vrot.slane %v933, 1
      %v980 = vsel %vm726, %v978, %v979
      %vm981 = vcmask 261120
      %v983 = vsel %vm981, %v437, %v695
      %v985 = vsel %vm981, %v438, %v697
      %v987 = vsel %vm981, %v439, %v699
      %v989 = vsel %vm981, %v440, %v701
      %v991 = vsel %vm981, %v441, %v703
      %v993 = vsel %vm981, %v442, %v705
      %v995 = vsel %vm981, %v443, %v707
      %v997 = vsel %vm981, %v444, %v709
      %v999 = vsel %vm981, %v445, %v711
      %v1001 = vsel %vm981, %v446, %v713
      %v1003 = vsel %vm981, %v447, %v715
      %v1005 = vsel %vm981, %v448, %v717
      %v1007 = vsel %vm981, %v449, %v719
      %v1009 = vsel %vm981, %v450, %v721
      %v1011 = vsel %vm981, %v451, %v723
      %v1013 = vsel %vm981, %v452, %v725
      %vm1014 = vcmask 523264
      %v1016 = vsel %vm1014, %v983, %v776
      %v1018 = vsel %vm1014, %v985, %v778
      %v1020 = vsel %vm1014, %v987, %v780
      %v1022 = vsel %vm1014, %v989, %v782
      %v1024 = vsel %vm1014, %v991, %v784
      %v1026 = vsel %vm1014, %v993, %v786
      %v1028 = vsel %vm1014, %v995, %v788
      %v1030 = vsel %vm1014, %v997, %v790
      %v1032 = vsel %vm1014, %v999, %v792
      %v1034 = vsel %vm1014, %v1001, %v794
      %v1036 = vsel %vm1014, %v1003, %v796
      %v1038 = vsel %vm1014, %v1005, %v798
      %v1040 = vsel %vm1014, %v1007, %v800
      %v1042 = vsel %vm1014, %v1009, %v802
      %v1044 = vsel %vm1014, %v1011, %v804
      %v1046 = vsel %vm1014, %v1013, %v806
      %vm1047 = vcmask 785408
      %v1049 = vsel %vm1047, %v1016, %v813
      %v1052 = vsel %vm1047, %v1018, %v815
      %v1055 = vsel %vm1047, %v1020, %v817
      %v1058 = vsel %vm1047, %v1022, %v819
      %v1061 = vsel %vm1047, %v1024, %v821
      %v1064 = vsel %vm1047, %v1026, %v823
      %v1067 = vsel %vm1047, %v1028, %v825
      %v1070 = vsel %vm1047, %v1030, %v827
      %v1073 = vsel %vm1047, %v1032, %v829
      %v1076 = vsel %vm1047, %v1034, %v831
      %v1079 = vsel %vm1047, %v1036, %v833
      %v1082 = vsel %vm1047, %v1038, %v835
      %v1085 = vsel %vm1047, %v1040, %v837
      %v1088 = vsel %vm1047, %v1042, %v839
      %v1091 = vsel %vm1047, %v1044, %v841
      %v1094 = vsel %vm1047, %v1046, %v843
      %v1098 = vsel %vm981, %v525, %v863
      %v1101 = vsel %vm981, %v537, %v865
      %v1104 = vsel %vm981, %v549, %v867
      %v1107 = vsel %vm981, %v561, %v869
      %v1110 = vsel %vm981, %v573, %v871
      %v1113 = vsel %vm981, %v585, %v873
      %v1116 = vsel %vm981, %v597, %v875
      %v1119 = vsel %vm981, %v609, %v877
      %v1122 = vsel %vm981, %v621, %v879
      %v1125 = vsel %vm981, %v633, %v881
      %v1128 = vsel %vm981, %v645, %v883
      %v1131 = vsel %vm981, %v657, %v885
      %v1134 = vsel %vm981, %v669, %v887
      %v1137 = vsel %vm981, %v681, %v889
      %v1140 = vsel %vm981, %v693, %v891
      %v1143 = vsel %vm981, %v858, %v893
      %v1145 = vsel %vm1014, %v1098, %v900
      %v1147 = vsel %vm1014, %v1101, %v902
      %v1149 = vsel %vm1014, %v1104, %v904
      %v1151 = vsel %vm1014, %v1107, %v906
      %v1153 = vsel %vm1014, %v1110, %v908
      %v1155 = vsel %vm1014, %v1113, %v910
      %v1157 = vsel %vm1014, %v1116, %v912
      %v1159 = vsel %vm1014, %v1119, %v914
      %v1161 = vsel %vm1014, %v1122, %v916
      %v1163 = vsel %vm1014, %v1125, %v918
      %v1165 = vsel %vm1014, %v1128, %v920
      %v1167 = vsel %vm1014, %v1131, %v922
      %v1169 = vsel %vm1014, %v1134, %v924
      %v1171 = vsel %vm1014, %v1137, %v926
      %v1173 = vsel %vm1014, %v1140, %v928
      %v1175 = vsel %vm1014, %v1143, %v930
      %v1177 = vsel %vm1047, %v1145, %v947
      %v1180 = vsel %vm1047, %v1147, %v949
      %v1183 = vsel %vm1047, %v1149, %v951
      %v1186 = vsel %vm1047, %v1151, %v953
      %v1189 = vsel %vm1047, %v1153, %v955
      %v1192 = vsel %vm1047, %v1155, %v957
      %v1195 = vsel %vm1047, %v1157, %v959
      %v1198 = vsel %vm1047, %v1159, %v961
      %v1201 = vsel %vm1047, %v1161, %v963
      %v1204 = vsel %vm1047, %v1163, %v965
      %v1207 = vsel %vm1047, %v1165, %v967
      %v1210 = vsel %vm1047, %v1167, %v969
      %v1213 = vsel %vm1047, %v1169, %v971
      %v1216 = vsel %vm1047, %v1171, %v973
      %v1219 = vsel %vm1047, %v1173, %v975
      %v1222 = vsel %vm1047, %v1175, %v977
      %v1224 = vld [vmem:[%s2] sm:$0xf]
      %v1225 = vld [vmem:[%s2 + $0x4] sm:$0xf]
      %v1226 = vld [vmem:[%s2 + $0x8] sm:$0xf]
      %v1227 = vld [vmem:[%s2 + $0xc] sm:$0xf]
      %v1228 = vld [vmem:[%s2 + $0x10] sm:$0xf]
      %v1229 = vld [vmem:[%s2 + $0x14] sm:$0xf]
      %v1230 = vld [vmem:[%s2 + $0x18] sm:$0xf]
      %v1231 = vld [vmem:[%s2 + $0x1c] sm:$0xf]
      %v1232 = vld [vmem:[%s2 + $0x20] sm:$0xf]
      %v1233 = vld [vmem:[%s2 + $0x24] sm:$0xf]
      %v1234 = vld [vmem:[%s2 + $0x28] sm:$0xf]
      %v1235 = vld [vmem:[%s2 + $0x2c] sm:$0xf]
      %v1236 = vld [vmem:[%s2 + $0x30] sm:$0xf]
      %v1237 = vld [vmem:[%s2 + $0x34] sm:$0xf]
      %v1238 = vld [vmem:[%s2 + $0x38] sm:$0xf]
      %v1239 = vld [vmem:[%s2 + $0x3c] sm:$0xf]
      %v1240 = vld [vmem:[%s2 + $0x40] sm:$0xf]
      %v1241 = vld [vmem:[%s2 + $0x44] sm:$0xf]
      %v1242 = vld [vmem:[%s2 + $0x48] sm:$0xf]
      %v1243 = vld [vmem:[%s2 + $0x4c] sm:$0xf]
      %v1244 = vld [vmem:[%s2 + $0x50] sm:$0xf]
      %v1245 = vld [vmem:[%s2 + $0x54] sm:$0xf]
      %v1246 = vld [vmem:[%s2 + $0x58] sm:$0xf]
      %v1247 = vld [vmem:[%s2 + $0x5c] sm:$0xf]
      %v1248 = vld [vmem:[%s2 + $0x60] sm:$0xf]
      %v1249 = vld [vmem:[%s2 + $0x64] sm:$0xf]
      %v1250 = vld [vmem:[%s2 + $0x68] sm:$0xf]
      %v1251 = vld [vmem:[%s2 + $0x6c] sm:$0xf]
      %v1252 = vld [vmem:[%s2 + $0x70] sm:$0xf]
      %v1253 = vld [vmem:[%s2 + $0x74] sm:$0xf]
      %v1254 = vld [vmem:[%s2 + $0x78] sm:$0xf]
      %v1255 = vld [vmem:[%s2 + $0x7c] sm:$0xf]
      %v1256 = vld [vmem:[%s2 + $0x80] sm:$0xf]
      %v1257 = vld [vmem:[%s2 + $0x84] sm:$0xf]
      %v1258 = vld [vmem:[%s2 + $0x88] sm:$0xf]
      %v1259 = vld [vmem:[%s2 + $0x8c] sm:$0xf]
      %v1260 = vld [vmem:[%s3] sm:$0x1]
      %v1262 = vperm.slane %v1260, 0
      %v1300 = vunpack.c.l.b16 %v1224
      %v1301 = vunpack.c.l.b16 %v1225
      %v1302 = vunpack.c.l.b16 %v1226
      %v1303 = vunpack.c.l.b16 %v1227
      %v1304 = vunpack.c.l.b16 %v1228
      %v1305 = vunpack.c.l.b16 %v1229
      %v1306 = vunpack.c.l.b16 %v1230
      %v1307 = vunpack.c.l.b16 %v1231
      %v1308 = vunpack.c.l.b16 %v1232
      %v1309 = vunpack.c.l.b16 %v1233
      %v1310 = vunpack.c.l.b16 %v1234
      %v1311 = vunpack.c.l.b16 %v1235
      %v1312 = vunpack.c.l.b16 %v1236
      %v1313 = vunpack.c.l.b16 %v1237
      %v1314 = vunpack.c.l.b16 %v1238
      %v1315 = vunpack.c.l.b16 %v1239
      %v1316 = vunpack.c.l.b16 %v1240
      %v1317 = vunpack.c.l.b16 %v1241
      %v1318 = vunpack.c.l.b16 %v1242
      %v1319 = vunpack.c.l.b16 %v1243
      %v1320 = vunpack.c.l.b16 %v1244
      %v1321 = vunpack.c.l.b16 %v1245
      %v1322 = vunpack.c.l.b16 %v1246
      %v1323 = vunpack.c.l.b16 %v1247
      %v1324 = vunpack.c.l.b16 %v1248
      %v1325 = vunpack.c.l.b16 %v1249
      %v1326 = vunpack.c.l.b16 %v1250
      %v1327 = vunpack.c.l.b16 %v1251
      %v1328 = vunpack.c.l.b16 %v1252
      %v1329 = vunpack.c.l.b16 %v1253
      %v1330 = vunpack.c.l.b16 %v1254
      %v1331 = vunpack.c.l.b16 %v1255
      %v1332 = vunpack.c.l.b16 %v1256
      %v1333 = vunpack.c.l.b16 %v1257
      %v1334 = vunpack.c.l.b16 %v1258
      %v1335 = vunpack.c.l.b16 %v1259
      %v1336 = vpack.c.b16 %v1301, %v1300
      %v1337 = vpack.c.b16 %v1303, %v1302
      %v1338 = vpack.c.b16 %v1305, %v1304
      %v1339 = vpack.c.b16 %v1307, %v1306
      %v1340 = vpack.c.b16 %v1309, %v1308
      %v1341 = vpack.c.b16 %v1311, %v1310
      %v1342 = vpack.c.b16 %v1313, %v1312
      %v1343 = vpack.c.b16 %v1315, %v1314
      %v1344 = vpack.c.b16 %v1317, %v1316
      %v1345 = vpack.c.b16 %v1319, %v1318
      %v1346 = vpack.c.b16 %v1321, %v1320
      %v1347 = vpack.c.b16 %v1323, %v1322
      %v1348 = vpack.c.b16 %v1325, %v1324
      %v1349 = vpack.c.b16 %v1327, %v1326
      %v1350 = vpack.c.b16 %v1329, %v1328
      %v1351 = vpack.c.b16 %v1331, %v1330
      %v1352 = vpack.c.b16 %v1333, %v1332
      %v1353 = vpack.c.b16 %v1335, %v1334
      %v1373 = vsel %vm981, %v735, 0
      %v1376 = vsel %vm981, %v738, 0
      %v1379 = vsel %vm981, %v741, 0
      %v1382 = vsel %vm981, %v744, 0
      %v1385 = vsel %vm981, %v747, 0
      %v1388 = vsel %vm981, %v750, 0
      %v1391 = vsel %vm981, %v753, 0
      %v1394 = vsel %vm981, %v756, 0
      %v1397 = vsel %vm981, %v759, 0
      %v1400 = vsel %vm981, %v762, 0
      %v1403 = vsel %vm981, %v765, 0
      %v1406 = vsel %vm981, %v768, 0
      %v1409 = vsel %vm981, %v771, 0
      %v1412 = vsel %vm981, %v774, 0
      %v1415 = vsel %vm981, %v861, 0
      %v1418 = vsel %vm981, %v980, 0
      %1420 = vmatpush.bf16.msra.mxu0 %v1343
      %1421 = vmatpush.bf16.msra.mxu0 %v1342
      %1422 = vmatpush.bf16.msra.mxu0 %v1341
      %1423 = vmatpush.bf16.msra.mxu0 %v1340
      %1424 = vmatpush.bf16.msra.mxu0 %v1339
      %1425 = vmatpush.bf16.msra.mxu0 %v1338
      %1426 = vmatpush.bf16.msra.mxu0 %v1337
      %1427 = vmatpush.bf16.msra.mxu0 %v1336
      %1428 = vmatmul.bf16.gmra.mxu0 %v1049
      %v1429 = vpop.f32.mrf.mxu0
      %v1430 = vadd.f32 %v1262, %v1429
      %v1431 = vpop.f32.mrf.mxu0
      %v1432 = vadd.f32 %v1262, %v1431
      %1433 = vmatmul.bf16.gmra.mxu0 %v1052
      %v1434 = vpop.f32.mrf.mxu0
      %v1435 = vadd.f32 %v1262, %v1434
      %v1436 = vpop.f32.mrf.mxu0
      %v1437 = vadd.f32 %v1262, %v1436
      %1438 = vmatmul.bf16.gmra.mxu0 %v1055
      %v1439 = vpop.f32.mrf.mxu0
      %v1440 = vadd.f32 %v1262, %v1439
      %v1441 = vpop.f32.mrf.mxu0
      %v1442 = vadd.f32 %v1262, %v1441
      %1443 = vmatmul.bf16.gmra.mxu0 %v1058
      %v1444 = vpop.f32.mrf.mxu0
      %v1445 = vadd.f32 %v1262, %v1444
      %v1446 = vpop.f32.mrf.mxu0
      %v1447 = vadd.f32 %v1262, %v1446
      %1448 = vmatmul.bf16.gmra.mxu0 %v1061
      %v1449 = vpop.f32.mrf.mxu0
      %v1450 = vadd.f32 %v1262, %v1449
      %v1451 = vpop.f32.mrf.mxu0
      %v1452 = vadd.f32 %v1262, %v1451
      %1453 = vmatmul.bf16.gmra.mxu0 %v1064
      %v1454 = vpop.f32.mrf.mxu0
      %v1455 = vadd.f32 %v1262, %v1454
      %v1456 = vpop.f32.mrf.mxu0
      %v1457 = vadd.f32 %v1262, %v1456
      %1458 = vmatmul.bf16.gmra.mxu0 %v1067
      %v1459 = vpop.f32.mrf.mxu0
      %v1460 = vadd.f32 %v1262, %v1459
      %v1461 = vpop.f32.mrf.mxu0
      %v1462 = vadd.f32 %v1262, %v1461
      %1463 = vmatmul.bf16.gmra.mxu0 %v1070
      %v1464 = vpop.f32.mrf.mxu0
      %v1465 = vadd.f32 %v1262, %v1464
      %v1466 = vpop.f32.mrf.mxu0
      %v1467 = vadd.f32 %v1262, %v1466
      %1468 = vmatmul.bf16.gmra.mxu0 %v1073
      %v1469 = vpop.f32.mrf.mxu0
      %v1470 = vadd.f32 %v1262, %v1469
      %v1471 = vpop.f32.mrf.mxu0
      %v1472 = vadd.f32 %v1262, %v1471
      %1473 = vmatmul.bf16.gmra.mxu0 %v1076
      %v1474 = vpop.f32.mrf.mxu0
      %v1475 = vadd.f32 %v1262, %v1474
      %v1476 = vpop.f32.mrf.mxu0
      %v1477 = vadd.f32 %v1262, %v1476
      %1478 = vmatmul.bf16.gmra.mxu0 %v1079
      %v1479 = vpop.f32.mrf.mxu0
      %v1480 = vadd.f32 %v1262, %v1479
      %v1481 = vpop.f32.mrf.mxu0
      %v1482 = vadd.f32 %v1262, %v1481
      %1483 = vmatmul.bf16.gmra.mxu0 %v1082
      %v1484 = vpop.f32.mrf.mxu0
      %v1485 = vadd.f32 %v1262, %v1484
      %v1486 = vpop.f32.mrf.mxu0
      %v1487 = vadd.f32 %v1262, %v1486
      %1488 = vmatmul.bf16.gmra.mxu0 %v1085
      %v1489 = vpop.f32.mrf.mxu0
      %v1490 = vadd.f32 %v1262, %v1489
      %v1491 = vpop.f32.mrf.mxu0
      %v1492 = vadd.f32 %v1262, %v1491
      %1493 = vmatmul.bf16.gmra.mxu0 %v1088
      %v1494 = vpop.f32.mrf.mxu0
      %v1495 = vadd.f32 %v1262, %v1494
      %v1496 = vpop.f32.mrf.mxu0
      %v1497 = vadd.f32 %v1262, %v1496
      %1498 = vmatmul.bf16.gmra.mxu0 %v1091
      %v1499 = vpop.f32.mrf.mxu0
      %v1500 = vadd.f32 %v1262, %v1499
      %v1501 = vpop.f32.mrf.mxu0
      %v1502 = vadd.f32 %v1262, %v1501
      %1503 = vmatmul.bf16.gmra.mxu0 %v1094
      %v1504 = vpop.f32.mrf.mxu0
      %v1505 = vadd.f32 %v1262, %v1504
      %v1506 = vpop.f32.mrf.mxu0
      %v1507 = vadd.f32 %v1262, %v1506
      %1508 = vdwg.mxu0
      %1509 = vmatpush.bf16.msra.mxu0 %v1351
      %1510 = vmatpush.bf16.msra.mxu0 %v1350
      %1511 = vmatpush.bf16.msra.mxu0 %v1349
      %1512 = vmatpush.bf16.msra.mxu0 %v1348
      %1513 = vmatpush.bf16.msra.mxu0 %v1347
      %1514 = vmatpush.bf16.msra.mxu0 %v1346
      %1515 = vmatpush.bf16.msra.mxu0 %v1345
      %1516 = vmatpush.bf16.msra.mxu0 %v1344
      %1517 = vmatmul.bf16.gmra.mxu0 %v1177
      %v1518 = vpop.f32.mrf.mxu0
      %v1519 = vadd.f32 %v1430, %v1518
      %v1520 = vpop.f32.mrf.mxu0
      %v1521 = vadd.f32 %v1432, %v1520
      %1522 = vmatmul.bf16.gmra.mxu0 %v1180
      %v1523 = vpop.f32.mrf.mxu0
      %v1524 = vadd.f32 %v1435, %v1523
      %v1525 = vpop.f32.mrf.mxu0
      %v1526 = vadd.f32 %v1437, %v1525
      %1527 = vmatmul.bf16.gmra.mxu0 %v1183
      %v1528 = vpop.f32.mrf.mxu0
      %v1529 = vadd.f32 %v1440, %v1528
      %v1530 = vpop.f32.mrf.mxu0
      %v1531 = vadd.f32 %v1442, %v1530
      %1532 = vmatmul.bf16.gmra.mxu0 %v1186
      %v1533 = vpop.f32.mrf.mxu0
      %v1534 = vadd.f32 %v1445, %v1533
      %v1535 = vpop.f32.mrf.mxu0
      %v1536 = vadd.f32 %v1447, %v1535
      %1537 = vmatmul.bf16.gmra.mxu0 %v1189
      %v1538 = vpop.f32.mrf.mxu0
      %v1539 = vadd.f32 %v1450, %v1538
      %v1540 = vpop.f32.mrf.mxu0
      %v1541 = vadd.f32 %v1452, %v1540
      %1542 = vmatmul.bf16.gmra.mxu0 %v1192
      %v1543 = vpop.f32.mrf.mxu0
      %v1544 = vadd.f32 %v1455, %v1543
      %v1545 = vpop.f32.mrf.mxu0
      %v1546 = vadd.f32 %v1457, %v1545
      %1547 = vmatmul.bf16.gmra.mxu0 %v1195
      %v1548 = vpop.f32.mrf.mxu0
      %v1549 = vadd.f32 %v1460, %v1548
      %v1550 = vpop.f32.mrf.mxu0
      %v1551 = vadd.f32 %v1462, %v1550
      %1552 = vmatmul.bf16.gmra.mxu0 %v1198
      %v1553 = vpop.f32.mrf.mxu0
      %v1554 = vadd.f32 %v1465, %v1553
      %v1555 = vpop.f32.mrf.mxu0
      %v1556 = vadd.f32 %v1467, %v1555
      %1557 = vmatmul.bf16.gmra.mxu0 %v1201
      %v1558 = vpop.f32.mrf.mxu0
      %v1559 = vadd.f32 %v1470, %v1558
      %v1560 = vpop.f32.mrf.mxu0
      %v1561 = vadd.f32 %v1472, %v1560
      %1562 = vmatmul.bf16.gmra.mxu0 %v1204
      %v1563 = vpop.f32.mrf.mxu0
      %v1564 = vadd.f32 %v1475, %v1563
      %v1565 = vpop.f32.mrf.mxu0
      %v1566 = vadd.f32 %v1477, %v1565
      %1567 = vmatmul.bf16.gmra.mxu0 %v1207
      %v1568 = vpop.f32.mrf.mxu0
      %v1569 = vadd.f32 %v1480, %v1568
      %v1570 = vpop.f32.mrf.mxu0
      %v1571 = vadd.f32 %v1482, %v1570
      %1572 = vmatmul.bf16.gmra.mxu0 %v1210
      %v1573 = vpop.f32.mrf.mxu0
      %v1574 = vadd.f32 %v1485, %v1573
      %v1575 = vpop.f32.mrf.mxu0
      %v1576 = vadd.f32 %v1487, %v1575
      %1577 = vmatmul.bf16.gmra.mxu0 %v1213
      %v1578 = vpop.f32.mrf.mxu0
      %v1579 = vadd.f32 %v1490, %v1578
      %v1580 = vpop.f32.mrf.mxu0
      %v1581 = vadd.f32 %v1492, %v1580
      %1582 = vmatmul.bf16.gmra.mxu0 %v1216
      %v1583 = vpop.f32.mrf.mxu0
      %v1584 = vadd.f32 %v1495, %v1583
      %v1585 = vpop.f32.mrf.mxu0
      %v1586 = vadd.f32 %v1497, %v1585
      %1587 = vmatmul.bf16.gmra.mxu0 %v1219
      %v1588 = vpop.f32.mrf.mxu0
      %v1589 = vadd.f32 %v1500, %v1588
      %v1590 = vpop.f32.mrf.mxu0
      %v1591 = vadd.f32 %v1502, %v1590
      %1592 = vmatmul.bf16.gmra.mxu0 %v1222
      %v1593 = vpop.f32.mrf.mxu0
      %v1594 = vadd.f32 %v1505, %v1593
      %v1595 = vpop.f32.mrf.mxu0
      %v1596 = vadd.f32 %v1507, %v1595
      %1597 = vdwg.mxu0
      %1598 = vmatpush.bf16.msra.mxu0 0
      %1599 = vmatpush.bf16.msra.mxu0 0
      %1600 = vmatpush.bf16.msra.mxu0 0
      %1601 = vmatpush.bf16.msra.mxu0 0
      %1602 = vmatpush.bf16.msra.mxu0 0
      %1603 = vmatpush.bf16.msra.mxu0 0
      %1604 = vmatpush.bf16.msra.mxu0 %v1353
      %1605 = vmatpush.bf16.msra.mxu0 %v1352
      %1606 = vmatmul.bf16.gmra.mxu0 %v1373
      %v1607 = vpop.f32.mrf.mxu0
      %v1608 = vadd.f32 %v1519, %v1607
      %v1609 = vpop.f32.mrf.mxu0
      %v1610 = vadd.f32 %v1521, %v1609
      %1611 = vmatmul.bf16.gmra.mxu0 %v1376
      %v1612 = vpop.f32.mrf.mxu0
      %v1613 = vadd.f32 %v1524, %v1612
      %v1614 = vpop.f32.mrf.mxu0
      %v1615 = vadd.f32 %v1526, %v1614
      %1616 = vmatmul.bf16.gmra.mxu0 %v1379
      %v1617 = vpop.f32.mrf.mxu0
      %v1618 = vadd.f32 %v1529, %v1617
      %v1619 = vpop.f32.mrf.mxu0
      %v1620 = vadd.f32 %v1531, %v1619
      %1621 = vmatmul.bf16.gmra.mxu0 %v1382
      %v1622 = vpop.f32.mrf.mxu0
      %v1623 = vadd.f32 %v1534, %v1622
      %v1624 = vpop.f32.mrf.mxu0
      %v1625 = vadd.f32 %v1536, %v1624
      %1626 = vmatmul.bf16.gmra.mxu0 %v1385
      %v1627 = vpop.f32.mrf.mxu0
      %v1628 = vadd.f32 %v1539, %v1627
      %v1629 = vpop.f32.mrf.mxu0
      %v1630 = vadd.f32 %v1541, %v1629
      %1631 = vmatmul.bf16.gmra.mxu0 %v1388
      %v1632 = vpop.f32.mrf.mxu0
      %v1633 = vadd.f32 %v1544, %v1632
      %v1634 = vpop.f32.mrf.mxu0
      %v1635 = vadd.f32 %v1546, %v1634
      %1636 = vmatmul.bf16.gmra.mxu0 %v1391
      %v1637 = vpop.f32.mrf.mxu0
      %v1638 = vadd.f32 %v1549, %v1637
      %v1639 = vpop.f32.mrf.mxu0
      %v1640 = vadd.f32 %v1551, %v1639
      %1641 = vmatmul.bf16.gmra.mxu0 %v1394
      %v1642 = vpop.f32.mrf.mxu0
      %v1643 = vadd.f32 %v1554, %v1642
      %v1644 = vpop.f32.mrf.mxu0
      %v1645 = vadd.f32 %v1556, %v1644
      %1646 = vmatmul.bf16.gmra.mxu0 %v1397
      %v1647 = vpop.f32.mrf.mxu0
      %v1648 = vadd.f32 %v1559, %v1647
      %v1649 = vpop.f32.mrf.mxu0
      %v1650 = vadd.f32 %v1561, %v1649
      %1651 = vmatmul.bf16.gmra.mxu0 %v1400
      %v1652 = vpop.f32.mrf.mxu0
      %v1653 = vadd.f32 %v1564, %v1652
      %v1654 = vpop.f32.mrf.mxu0
      %v1655 = vadd.f32 %v1566, %v1654
      %1656 = vmatmul.bf16.gmra.mxu0 %v1403
      %v1657 = vpop.f32.mrf.mxu0
      %v1658 = vadd.f32 %v1569, %v1657
      %v1659 = vpop.f32.mrf.mxu0
      %v1660 = vadd.f32 %v1571, %v1659
      %1661 = vmatmul.bf16.gmra.mxu0 %v1406
      %v1662 = vpop.f32.mrf.mxu0
      %v1663 = vadd.f32 %v1574, %v1662
      %v1664 = vpop.f32.mrf.mxu0
      %v1665 = vadd.f32 %v1576, %v1664
      %1666 = vmatmul.bf16.gmra.mxu0 %v1409
      %v1667 = vpop.f32.mrf.mxu0
      %v1668 = vadd.f32 %v1579, %v1667
      %v1669 = vpop.f32.mrf.mxu0
      %v1670 = vadd.f32 %v1581, %v1669
      %1671 = vmatmul.bf16.gmra.mxu0 %v1412
      %v1672 = vpop.f32.mrf.mxu0
      %v1673 = vadd.f32 %v1584, %v1672
      %v1674 = vpop.f32.mrf.mxu0
      %v1675 = vadd.f32 %v1586, %v1674
      %1676 = vmatmul.bf16.gmra.mxu0 %v1415
      %v1677 = vpop.f32.mrf.mxu0
      %v1678 = vadd.f32 %v1589, %v1677
      %v1679 = vpop.f32.mrf.mxu0
      %v1680 = vadd.f32 %v1591, %v1679
      %1681 = vmatmul.bf16.gmra.mxu0 %v1418
      %v1682 = vpop.f32.mrf.mxu0
      %v1683 = vadd.f32 %v1594, %v1682
      %v1684 = vpop.f32.mrf.mxu0
      %v1685 = vadd.f32 %v1596, %v1684
      %1686 = vdwg.mxu0
      %1687 = vxpose.xlu0.b32.start [1/16] %v1608, 128
      %1688 = vxpose.xlu0.b32.cont [2/16] %v1610, 128
      %1689 = vxpose.xlu0.b32.cont [3/16] %v1613, 128
      %1690 = vxpose.xlu0.b32.cont [4/16] %v1615, 128
      %1691 = vxpose.xlu0.b32.cont [5/16] %v1618, 128
      %1692 = vxpose.xlu0.b32.cont [6/16] %v1620, 128
      %1693 = vxpose.xlu0.b32.cont [7/16] %v1623, 128
      %1694 = vxpose.xlu0.b32.cont [8/16] %v1625, 128
      %1695 = vxpose.xlu0.b32.cont [9/16] %v1628, 128
      %1696 = vxpose.xlu0.b32.cont [10/16] %v1630, 128
      %1697 = vxpose.xlu0.b32.cont [11/16] %v1633, 128
      %1698 = vxpose.xlu0.b32.cont [12/16] %v1635, 128
      %1699 = vxpose.xlu0.b32.cont [13/16] %v1638, 128
      %1700 = vxpose.xlu0.b32.cont [14/16] %v1640, 128
      %1701 = vxpose.xlu0.b32.cont [15/16] %v1643, 128
      %1702 = vxpose.xlu0.b32.end [16/16] %v1645, 128
      %v1703 = vpop.trf.xlu0
      %v1704 = vpop.trf.xlu0
      %v1705 = vpop.trf.xlu0
      %v1706 = vpop.trf.xlu0
      %v1707 = vpop.trf.xlu0
      %v1708 = vpop.trf.xlu0
      %v1709 = vpop.trf.xlu0
      %v1710 = vpop.trf.xlu0
      %v1711 = vpop.trf.xlu0
      %v1712 = vpop.trf.xlu0
      %v1713 = vpop.trf.xlu0
      %v1714 = vpop.trf.xlu0
      %v1715 = vpop.trf.xlu0
      %v1716 = vpop.trf.xlu0
      %v1717 = vpop.trf.xlu0
      %v1718 = vpop.trf.xlu0
      %1719 = vxpose.xlu0.b32.start [1/16] %v1648, 128
      %1720 = vxpose.xlu0.b32.cont [2/16] %v1650, 128
      %1721 = vxpose.xlu0.b32.cont [3/16] %v1653, 128
      %1722 = vxpose.xlu0.b32.cont [4/16] %v1655, 128
      %1723 = vxpose.xlu0.b32.cont [5/16] %v1658, 128
      %1724 = vxpose.xlu0.b32.cont [6/16] %v1660, 128
      %1725 = vxpose.xlu0.b32.cont [7/16] %v1663, 128
      %1726 = vxpose.xlu0.b32.cont [8/16] %v1665, 128
      %1727 = vxpose.xlu0.b32.cont [9/16] %v1668, 128
      %1728 = vxpose.xlu0.b32.cont [10/16] %v1670, 128
      %1729 = vxpose.xlu0.b32.cont [11/16] %v1673, 128
      %1730 = vxpose.xlu0.b32.cont [12/16] %v1675, 128
      %1731 = vxpose.xlu0.b32.cont [13/16] %v1678, 128
      %1732 = vxpose.xlu0.b32.cont [14/16] %v1680, 128
      %1733 = vxpose.xlu0.b32.cont [15/16] %v1683, 128
      %1734 = vxpose.xlu0.b32.end [16/16] %v1685, 128
      %v1735 = vpop.trf.xlu0
      %v1736 = vpop.trf.xlu0
      %v1737 = vpop.trf.xlu0
      %v1738 = vpop.trf.xlu0
      %v1739 = vpop.trf.xlu0
      %v1740 = vpop.trf.xlu0
      %v1741 = vpop.trf.xlu0
      %v1742 = vpop.trf.xlu0
      %v1743 = vpop.trf.xlu0
      %v1744 = vpop.trf.xlu0
      %v1745 = vpop.trf.xlu0
      %v1746 = vpop.trf.xlu0
      %v1747 = vpop.trf.xlu0
      %v1748 = vpop.trf.xlu0
      %v1749 = vpop.trf.xlu0
      %v1750 = vpop.trf.xlu0
      %1751 = vst [vmem:[%s316] sm:$0xff] %v1703
      %1752 = vst [vmem:[%s316 + $0x8] sm:$0xff] %v1735
      %1753 = vst [vmem:[%s316 + $0x10] sm:$0xff] %v1704
      %1754 = vst [vmem:[%s316 + $0x18] sm:$0xff] %v1736
      %1755 = vst [vmem:[%s316 + $0x20] sm:$0x1f] %v1705
      %1756 = vst [vmem:[%s316 + $0x28] sm:$0x1f] %v1737
      %s1757 = smul.u32 2, %s19
      %p1758 = scmp.lt.s32.totalorder %s20, 1
      %s1759 = scalar_select %p1758, %s20, 1
      %p1760 = scmp.lt.s32.totalorder %s1757, 1
      %s1761 = scalar_select %p1760, %s1757, 1
      %s1762 = smul.addr %s1759, 6
      %s1763 = sadd.s32 %s1761, %s1762
      %s1764 = smul.addr %s1763, 8
      %s1765 = scalar_lea.vmem %s4, %s1764
      // Predicated region
      $region37: #{tpu_custom_call.1} parent=35 // pred_check
        %p1766 = pneg %p149
      $region38: #{tpu_custom_call.1} parent=35 // pred_check_branch
        %1768 = sbr.rel (%p1766) target = $region40
      $region39: #{tpu_custom_call.1} parent=35 // pred_region
        %s1769 = smul.u32 2, %s19
      $region40: #{tpu_custom_call.1} parent=35 // pred_fallthru
        _
    $region36: #{tpu_custom_call.1} parent=5 // pred_fallthru
      _
    %p1770 = scmp.le.s32.totalorder 2, %s10
    // Predicated region
    $region41: #{tpu_custom_call.1} parent=5 // pred_check
      %p1771 = pneg %p1770
    $region42: #{tpu_custom_call.1} parent=5 // pred_check_branch
      %1773 = sbr.rel (%p1771) target = $region44
    $region43: #{tpu_custom_call.1} parent=5 // pred_region
      %s1774 = ssub.s32 %s10, 2
      // Predicated region
      $region45: #{tpu_custom_call.1} parent=43 // pred_check
        %p1775 = pneg %p155
      $region46: #{tpu_custom_call.1} parent=43 // pred_check_branch
        %1777 = sbr.rel (%p1775) target = $region48
      $region47: #{tpu_custom_call.1} parent=43 // pred_region
        %s1778 = smul.u32 2, %s21
        %p1779 = scmp.lt.s32.totalorder %s22, 1
        %s1780 = scalar_select %p1779, %s22, 1
        %p1781 = scmp.lt.s32.totalorder %s1778, 1
        %s1782 = scalar_select %p1781, %s1778, 1
        %s1783 = smul.addr %s1780, 6
        %s1784 = sadd.s32 %s1782, %s1783
        %s1785 = smul.addr %s1784, 8
        %s1786 = scalar_lea.vmem %s4, %s1785
      $region48: #{tpu_custom_call.1} parent=43 // pred_fallthru
        _
    $region44: #{tpu_custom_call.1} parent=5 // pred_fallthru
      _
  $region6: #{tpu_custom_call.1} parent=0 // loop_footer
    %s14 = sadd.s32 1, %s10
  $region7: #{tpu_custom_call.1} parent=0 // loop_footer_branch
    %9 = sbr.rel target = $region3
  $region8: #{tpu_custom_call.1} parent=0 // loop_exit
    _

</llo_original>
